<compile_context>
chip_gen: v7x
topology: tpu7x:2x2x1
jax: 0.10.0
libtpu: 0.0.40
codegen_flags: <defaults>
</compile_context>

<pallas_src>
import functools

import jax
import jax.numpy as jnp
from jax import lax
from jax.experimental import pallas as pl
from jax.experimental.pallas import tpu as pltpu

LANE = 128  # pad channel (last) dim to a lane-dense multiple of 128


# ----------------------------- pass 1: conv matmul + partial batch stats -----------------------------
def _conv_stats_kernel(x_ref, w_ref, conv_ref, stats_ref):
    # x_ref:     (TM, 2K)     bf16 block-complex im2col patches  [real | imag]
    # w_ref:     (2K, C2p)    bf16 block-complex weights [[Wr, Wi], [-Wi, Wr]] (zero-padded)
    # conv_ref:  (TM, C2p)    f32 conv output for this tile
    # stats_ref: (1, 2, C2p)  f32 per-tile [sum ; sum-of-squares] over rows
    y = jnp.dot(x_ref[...], w_ref[...], preferred_element_type=jnp.float32)
    conv_ref[...] = y
    s = jnp.sum(y, axis=0, keepdims=True)
    ss = jnp.sum(y * y, axis=0, keepdims=True)
    stats_ref[...] = jnp.concatenate([s, ss], axis=0)[None, :, :]


# ----------------------------- pass 2: folded BN + CLeakyReLU -----------------------------
def _bn_act_kernel(y_ref, ss_ref, out_ref, *, slope):
    # y_ref:  (TM, C2p) f32 conv output tile
    # ss_ref: (2, C2p)  f32 row 0 = scale, row 1 = shift (BN folded per channel)
    # out_ref:(TM, C2p) f32 activated output
    ss = ss_ref[...]
    n = y_ref[...] * ss[0:1, :] + ss[1:2, :]
    out_ref[...] = jnp.maximum(n, slope * n)


# ----------------------------- Encoder forward wrapper -----------------------------
def encoder_forward(xr, xi, params, *, eps=1e-5, slope=0.01, tm=256):
    N, H, W, Cin = xr.shape
    KH, KW, _, Cout = params["wr"].shape
    ph, pw = 1, 1                       # 'same' padding for 3x3, stride 1
    M = N * H * W
    K = KH * KW * Cin
    K2, C2 = 2 * K, 2 * Cout
    C2p = ((C2 + LANE - 1) // LANE) * LANE

    Mp = ((M + tm - 1) // tm) * tm      # zero-padded rows are stat-neutral (contribute 0)
    n_tiles = Mp // tm

    # --- layout plumbing (contiguous concat/reshape/pad, done once in XLA) ---
    def im2col(x):
        xp = jnp.pad(x, [(0, 0), (ph, ph), (pw, pw), (0, 0)])
        cols = [xp[:, kh:kh + H, kw:kw + W, :]
                for kh in range(KH) for kw in range(KW)]
        return jnp.concatenate(cols, axis=-1).reshape(M, K)

    x_blk = jnp.concatenate([im2col(xr), im2col(xi)], axis=-1)              # (M, 2K)
    x_blk = jnp.pad(x_blk, [(0, Mp - M), (0, 0)]).astype(jnp.bfloat16)      # (Mp, 2K)

    wr = params["wr"].reshape(K, Cout)
    wi = params["wi"].reshape(K, Cout)
    w_blk = jnp.concatenate(
        [jnp.concatenate([wr, wi], axis=1),
         jnp.concatenate([-wi, wr], axis=1)], axis=0)                       # (2K, 2Cout)
    w_blk = jnp.pad(w_blk, [(0, 0), (0, C2p - C2)]).astype(jnp.bfloat16)    # (2K, C2p)

    # NOTE: the CConv2d bias is intentionally omitted: under train-mode BatchNorm the
    # per-channel bias is exactly cancelled by the mean subtraction.

    # ---- pass 1: conv matmul + per-tile partial stats (parallel over M tiles) ----
    conv, stats = pl.pallas_call(
        _conv_stats_kernel,
        out_shape=(jax.ShapeDtypeStruct((Mp, C2p), jnp.float32),
                   jax.ShapeDtypeStruct((n_tiles, 2, C2p), jnp.float32)),
        grid=(n_tiles,),
        in_specs=[
            pl.BlockSpec((tm, K2), lambda i: (i, 0)),
            pl.BlockSpec((K2, C2p), lambda i: (0, 0)),     # resident weight, DMA'd once
        ],
        out_specs=(pl.BlockSpec((tm, C2p), lambda i: (i, 0)),
                   pl.BlockSpec((1, 2, C2p), lambda i: (i, 0, 0))),
        compiler_params=pltpu.CompilerParams(dimension_semantics=("parallel",)),
    )(x_blk, w_blk)

    # ---- finalize batch statistics (biased var) and fold BN into scale/shift ----
    total = jnp.sum(stats, axis=0)                         # (2, C2p)
    mean = total[0] / M
    var = jnp.maximum(total[1] / M - mean * mean, 0.0)
    gamma = jnp.pad(jnp.concatenate([params["bn_gr"], params["bn_gi"]]), (0, C2p - C2))
    beta = jnp.pad(jnp.concatenate([params["bn_br"], params["bn_bi"]]), (0, C2p - C2))
    scale = gamma * lax.rsqrt(var + eps)
    shift = beta - mean * scale
    ss = jnp.stack([scale, shift], axis=0)                 # (2, C2p)

    # ---- pass 2: normalize + CLeakyReLU (parallel over M tiles) ----
    out = pl.pallas_call(
        functools.partial(_bn_act_kernel, slope=slope),
        out_shape=jax.ShapeDtypeStruct((Mp, C2p), jnp.float32),
        grid=(n_tiles,),
        in_specs=[
            pl.BlockSpec((tm, C2p), lambda i: (i, 0)),
            pl.BlockSpec((2, C2p), lambda i: (0, 0)),      # resident scale/shift row
        ],
        out_specs=pl.BlockSpec((tm, C2p), lambda i: (i, 0)),
        compiler_params=pltpu.CompilerParams(dimension_semantics=("parallel",)),
    )(conv, ss)

    out_r = out[:M, :Cout].reshape(N, H, W, Cout)
    out_i = out[:M, Cout:C2].reshape(N, H, W, Cout)
    return out_r, out_i


# ----------------------------- parameter init (deterministic) -----------------------------
def init_params(key, cin, cout, kh, kw):
    k1, k2, k3, k4 = jax.random.split(key, 4)
    fan_in = cin * kh * kw
    fan_out = cout * kh * kw
    bound_w = (6.0 / (fan_in + fan_out)) ** 0.5        # xavier_uniform_
    bound_b = 1.0 / (fan_in ** 0.5)                    # PyTorch default conv bias init
    wr = jax.random.uniform(k1, (kh, kw, cin, cout), jnp.float32, -bound_w, bound_w)
    wi = jax.random.uniform(k2, (kh, kw, cin, cout), jnp.float32, -bound_w, bound_w)
    br = jax.random.uniform(k3, (cout,), jnp.float32, -bound_b, bound_b)
    bi = jax.random.uniform(k4, (cout,), jnp.float32, -bound_b, bound_b)
    return dict(
        wr=wr, wi=wi, br=br, bi=bi,
        bn_gr=jnp.ones((cout,), jnp.float32), bn_br=jnp.zeros((cout,), jnp.float32),
        bn_gi=jnp.ones((cout,), jnp.float32), bn_bi=jnp.zeros((cout,), jnp.float32),
    )


# ----------------------------- pure-JAX reference (matching bf16 operand precision) -----------------------------
def encoder_ref(xr, xi, p):
    def conv(x, w):
        return lax.conv_general_dilated(
            x.astype(jnp.bfloat16), w.astype(jnp.bfloat16),
            window_strides=(1, 1), padding=[(1, 1), (1, 1)],
            dimension_numbers=("NHWC", "HWIO", "NHWC"),
            preferred_element_type=jnp.float32)

    # Reference keeps the conv bias to demonstrate it cancels under train-mode BN.
    cr = conv(xr, p["wr"]) - conv(xi, p["wi"]) + (p["br"] - p["bi"])
    ci = conv(xr, p["wi"]) + conv(xi, p["wr"]) + (p["br"] + p["bi"])

    def bn_act(y, g, b):
        m = jnp.mean(y, axis=(0, 1, 2), keepdims=True)
        v = jnp.mean((y - m) ** 2, axis=(0, 1, 2), keepdims=True)
        n = (y - m) / jnp.sqrt(v + 1e-5) * g + b
        return jnp.where(n >= 0, n, 0.01 * n)

    return bn_act(cr, p["bn_gr"], p["bn_br"]), bn_act(ci, p["bn_gi"], p["bn_bi"])


if __name__ == "__main__":
    N, H, W = 2, 16, 16
    Cin = Cout = 32
    KH = KW = 3

    key = jax.random.PRNGKey(0)
    kx, kxi, kp = jax.random.split(key, 3)
    xr = jax.random.normal(kx, (N, H, W, Cin), jnp.float32)
    xi = jax.random.normal(kxi, (N, H, W, Cin), jnp.float32)
    params = init_params(kp, Cin, Cout, KH, KW)

    fwd = jax.jit(encoder_forward)
    out_r, out_i = fwd(xr, xi, params)
    jax.block_until_ready((out_r, out_i))

    ref_r, ref_i = encoder_ref(xr, xi, params)
    assert out_r.shape == (N, H, W, Cout) and out_i.shape == (N, H, W, Cout)
    assert jnp.allclose(out_r, ref_r, rtol=1e-2, atol=1e-2)
    assert jnp.allclose(out_i, ref_i, rtol=1e-2, atol=1e-2)

    print("KERNEL_OK")
</pallas_src>

<mosaic_0001>
module attributes {stable_mosaic.version = 11 : i64} {
  func.func @_conv_stats_kernel(%arg0: i32, %arg1: memref<256x576xbf16, #tpu.memory_space<vmem>>, %arg2: memref<576x128xbf16, #tpu.memory_space<vmem>>, %arg3: memref<256x128xf32, #tpu.memory_space<vmem>>, %arg4: memref<1x2x128xf32, #tpu.memory_space<vmem>>) attributes {dimension_semantics = [#tpu.dimension_semantics<parallel>], iteration_bounds = array<i64: 2>, scalar_prefetch = 0 : i64, scratch_operands = 0 : i64, tpu.core_type = #tpu.core_type<tc>, window_params = [{transform_indices = @transform_0, window_bounds = array<i64: 256, 576>}, {pipeline_mode = #tpu.pipeline_mode<synchronous>, transform_indices = @transform_1, window_bounds = array<i64: 576, 128>}, {transform_indices = @transform_2, window_bounds = array<i64: 256, 128>}, {transform_indices = @transform_3, window_bounds = array<i64: 1, 2, 128>}]} {
    %c0 = arith.constant 0 : index
    %c0_0 = arith.constant 0 : index
    %0 = vector.load %arg1[%c0, %c0_0] : memref<256x576xbf16, #tpu.memory_space<vmem>>, vector<256x576xbf16>
    %c0_1 = arith.constant 0 : index
    %c0_2 = arith.constant 0 : index
    %1 = vector.load %arg2[%c0_1, %c0_2] : memref<576x128xbf16, #tpu.memory_space<vmem>>, vector<576x128xbf16>
    %cst = arith.constant dense<0.000000e+00> : vector<256x128xf32>
    %2 = tpu.matmul %0, %1, %cst {dimension_numbers = #tpu.dot_dimension_numbers<[1], [0], [0], [1], [0, 0, 1, 1], [], []>} : vector<256x576xbf16>, vector<576x128xbf16>, vector<256x128xf32> -> vector<256x128xf32>
    %c0_3 = arith.constant 0 : index
    %c0_4 = arith.constant 0 : index
    %3 = vector.load %arg3[%c0_3, %c0_4] : memref<256x128xf32, #tpu.memory_space<vmem>>, vector<256x128xf32>
    tpu.vector_store %arg3[%c0_3, %c0_4], %2 {strides = array<i32>} : memref<256x128xf32, #tpu.memory_space<vmem>>, vector<256x128xf32>,
    %cst_5 = arith.constant dense<0.000000e+00> : vector<128xf32>
    %4 = vector.multi_reduction <add>, %2, %cst_5 [0] : vector<256x128xf32> to vector<128xf32>
    %5 = vector.shape_cast %4 : vector<128xf32> to vector<1x128xf32>
    %6 = arith.mulf %2, %2 : vector<256x128xf32>
    %cst_6 = arith.constant dense<0.000000e+00> : vector<128xf32>
    %7 = vector.multi_reduction <add>, %6, %cst_6 [0] : vector<256x128xf32> to vector<128xf32>
    %8 = vector.shape_cast %7 : vector<128xf32> to vector<1x128xf32>
    %9 = tpu.concatenate %5, %8 in 0 : vector<1x128xf32>, vector<1x128xf32> -> vector<2x128xf32>
    %10 = vector.shape_cast %9 : vector<2x128xf32> to vector<1x2x128xf32>
    %c0_7 = arith.constant 0 : index
    %c0_8 = arith.constant 0 : index
    %c0_9 = arith.constant 0 : index
    %11 = vector.load %arg4[%c0_7, %c0_8, %c0_9] : memref<1x2x128xf32, #tpu.memory_space<vmem>>, vector<1x2x128xf32>
    tpu.vector_store %arg4[%c0_7, %c0_8, %c0_9], %10 {strides = array<i32>} : memref<1x2x128xf32, #tpu.memory_space<vmem>>, vector<1x2x128xf32>,
    return
  }
  func.func @transform_0(%arg0: i32) -> (i32, i32) {
    %c0_i32 = arith.constant 0 : i32
    %c0_i32_0 = arith.constant 0 : i32
    return %arg0, %c0_i32 : i32, i32
  }
  func.func @transform_1(%arg0: i32) -> (i32, i32) {
    %c0_i32 = arith.constant 0 : i32
    %c0_i32_0 = arith.constant 0 : i32
    %c0_i32_1 = arith.constant 0 : i32
    return %c0_i32, %c0_i32_0 : i32, i32
  }
  func.func @transform_2(%arg0: i32) -> (i32, i32) {
    %c0_i32 = arith.constant 0 : i32
    %c0_i32_0 = arith.constant 0 : i32
    return %arg0, %c0_i32 : i32, i32
  }
  func.func @transform_3(%arg0: i32) -> (i32, i32, i32) {
    %c0_i32 = arith.constant 0 : i32
    %c0_i32_0 = arith.constant 0 : i32
    %c0_i32_1 = arith.constant 0 : i32
    return %arg0, %c0_i32, %c0_i32_0 : i32, i32, i32
  }
}

module attributes {stable_mosaic.version = 11 : i64} {
  func.func @_bn_act_kernel(%arg0: i32, %arg1: memref<256x128xf32, #tpu.memory_space<vmem>>, %arg2: memref<2x128xf32, #tpu.memory_space<vmem>>, %arg3: memref<256x128xf32, #tpu.memory_space<vmem>>) attributes {dimension_semantics = [#tpu.dimension_semantics<parallel>], iteration_bounds = array<i64: 2>, scalar_prefetch = 0 : i64, scratch_operands = 0 : i64, tpu.core_type = #tpu.core_type<tc>, window_params = [{transform_indices = @transform_0, window_bounds = array<i64: 256, 128>}, {pipeline_mode = #tpu.pipeline_mode<synchronous>, transform_indices = @transform_1, window_bounds = array<i64: 2, 128>}, {transform_indices = @transform_2, window_bounds = array<i64: 256, 128>}]} {
    %c0 = arith.constant 0 : index
    %c0_0 = arith.constant 0 : index
    %0 = vector.load %arg2[%c0, %c0_0] : memref<2x128xf32, #tpu.memory_space<vmem>>, vector<2x128xf32>
    %c0_1 = arith.constant 0 : index
    %c0_2 = arith.constant 0 : index
    %1 = vector.load %arg1[%c0_1, %c0_2] : memref<256x128xf32, #tpu.memory_space<vmem>>, vector<256x128xf32>
    %2 = vector.extract_strided_slice %0 {offsets = [0, 0], sizes = [1, 128], strides = [1, 1]} : vector<2x128xf32> to vector<1x128xf32>
    %3 = vector.broadcast %2 : vector<1x128xf32> to vector<256x128xf32>
    %4 = arith.mulf %1, %3 : vector<256x128xf32>
    %5 = vector.extract_strided_slice %0 {offsets = [1, 0], sizes = [1, 128], strides = [1, 1]} : vector<2x128xf32> to vector<1x128xf32>
    %6 = vector.broadcast %5 : vector<1x128xf32> to vector<256x128xf32>
    %7 = arith.addf %4, %6 : vector<256x128xf32>
    %cst = arith.constant 0.00999999977 : f32
    %8 = vector.broadcast %cst : f32 to vector<256x128xf32>
    %9 = arith.mulf %8, %7 : vector<256x128xf32>
    %10 = arith.maximumf %7, %9 : vector<256x128xf32>
    %c0_3 = arith.constant 0 : index
    %c0_4 = arith.constant 0 : index
    %11 = vector.load %arg3[%c0_3, %c0_4] : memref<256x128xf32, #tpu.memory_space<vmem>>, vector<256x128xf32>
    tpu.vector_store %arg3[%c0_3, %c0_4], %10 {strides = array<i32>} : memref<256x128xf32, #tpu.memory_space<vmem>>, vector<256x128xf32>,
    return
  }
  func.func @transform_0(%arg0: i32) -> (i32, i32) {
    %c0_i32 = arith.constant 0 : i32
    %c0_i32_0 = arith.constant 0 : i32
    return %arg0, %c0_i32 : i32, i32
  }
  func.func @transform_1(%arg0: i32) -> (i32, i32) {
    %c0_i32 = arith.constant 0 : i32
    %c0_i32_0 = arith.constant 0 : i32
    %c0_i32_1 = arith.constant 0 : i32
    return %c0_i32, %c0_i32_0 : i32, i32
  }
  func.func @transform_2(%arg0: i32) -> (i32, i32) {
    %c0_i32 = arith.constant 0 : i32
    %c0_i32_0 = arith.constant 0 : i32
    return %arg0, %c0_i32 : i32, i32
  }
}

</mosaic_0001>

<llo_original>
// kernel: encoder_forward.3
$region0: #{encoder_forward.3}
  #allocation0 [shape = 'u32[]', space=smem, size = 0x4, offset = 0x4, fixed_abs, tag = 'smem constant byte address 0x4 - core index']
  #allocation1 [shape = 'u32[144,128]{1,0:T(1,128)}', space=vmem, size = 0x12000, scoped, tag = 'internal scratch']
  %s0 = inlined_call_operand.vmem [shape: f32[512,128], index: 0, kind: input, shape index: {}]
  %s1 = inlined_call_operand.vmem [shape: f32[2,128], index: 1, kind: input, shape index: {}]
  %s2 = inlined_call_operand.vmem [shape: f32[512,128], index: 2, kind: output, shape index: {}]
  %s3 = sld [smem:[#allocation0]]
  $region41: #{encoder_forward.3} parent=0
    _
  %s5 = ssub.s32 1, %s3
  %s6 = scalar_select 0, %s5, %s3
  loop: start=0, step=1, limit=4
  $region2: #{encoder_forward.3} parent=0 // loop_pre_header
    _
  $region3: #{encoder_forward.3} parent=0 // loop_header
    %s8 = sphi 0, %s12
    %p9 = scmp.ge.s32.totalorder %s8, 4
    %s18 = sphi 0, %s20
    %s21 = sphi 0, %s18
    %s22 = sphi 0, %s21
    %s38 = sphi 0, %s22
    %s42 = sphi 0, %s42
    %s44 = sphi 0, %s42
    %s45 = sphi 0, %s44
    %s59 = sphi 0, %s45
    %s65 = sphi 0, %s67
    %s68 = sphi 0, %s65
    %s69 = sphi 0, %s68
    %s85 = sphi 0, %s69
  $region4: #{encoder_forward.3} parent=0 // loop_header_branch
    %11 = sbr.rel (%p9) target = $region8
  $region5: #{encoder_forward.3} parent=0 // loop_body
    %s13 = ssub.s32 %s8, 1
    %s14 = ssub.s32 %s8, 2
    %s15 = sadd.s32 %s8, 1
    %s16 = ssub.s32 %s8, %s15
    %p17 = scmp.eq.s32.totalorder %s16, 0
    %s19 = sadd.s32 %s18, 1
    %s20 = scalar_select %p17, %s18, %s19
    %p23 = pneg %p17
    %p24 = scmp.eq.s32.totalorder %s8, 1
    %p25 = por %p23, %p24
    %p26 = scmp.ne.s32.totalorder %s18, %s21
    %p27 = scmp.eq.s32.totalorder %s8, 0
    %p28 = por %p26, %p27
    %p29 = scmp.ne.s32.totalorder %s18, %s21
    %p30 = scmp.eq.s32.totalorder %s13, 1
    %p31 = por %p29, %p30
    %p32 = scmp.ne.s32.totalorder %s21, %s22
    %p33 = scmp.eq.s32.totalorder %s13, 0
    %p34 = por %p32, %p33
    %p35 = scmp.ne.s32.totalorder %s21, %s22
    %p36 = scmp.eq.s32.totalorder %s14, 1
    %p37 = por %p35, %p36
    %p39 = scmp.ne.s32.totalorder %s22, %s38
    %p40 = scmp.eq.s32.totalorder %s14, 0
    %p41 = por %p39, %p40
    %s43 = sadd.s32 %s42, 1
    %p46 = scmp.eq.s32.totalorder %s8, 1
    %p47 = scmp.ne.s32.totalorder %s42, %s44
    %p48 = scmp.eq.s32.totalorder %s8, 0
    %p49 = por %p47, %p48
    %p50 = scmp.ne.s32.totalorder %s42, %s44
    %p51 = scmp.eq.s32.totalorder %s13, 1
    %p52 = por %p50, %p51
    %p53 = scmp.ne.s32.totalorder %s44, %s45
    %p54 = scmp.eq.s32.totalorder %s13, 0
    %p55 = por %p53, %p54
    %p56 = scmp.ne.s32.totalorder %s44, %s45
    %p57 = scmp.eq.s32.totalorder %s14, 1
    %p58 = por %p56, %p57
    %p60 = scmp.ne.s32.totalorder %s45, %s59
    %p61 = scmp.eq.s32.totalorder %s14, 0
    %p62 = por %p60, %p61
    %s63 = ssub.s32 %s8, %s15
    %p64 = scmp.eq.s32.totalorder %s63, 0
    %s66 = sadd.s32 %s65, 1
    %s67 = scalar_select %p64, %s65, %s66
    %p70 = pneg %p64
    %p71 = scmp.eq.s32.totalorder %s8, 1
    %p72 = por %p70, %p71
    %p73 = scmp.ne.s32.totalorder %s65, %s68
    %p74 = scmp.eq.s32.totalorder %s8, 0
    %p75 = por %p73, %p74
    %p76 = scmp.ne.s32.totalorder %s65, %s68
    %p77 = scmp.eq.s32.totalorder %s13, 1
    %p78 = por %p76, %p77
    %p79 = scmp.ne.s32.totalorder %s68, %s69
    %p80 = scmp.eq.s32.totalorder %s13, 0
    %p81 = por %p79, %p80
    %p82 = scmp.ne.s32.totalorder %s68, %s69
    %p83 = scmp.eq.s32.totalorder %s14, 1
    %p84 = por %p82, %p83
    %p86 = scmp.ne.s32.totalorder %s69, %s85
    %p87 = scmp.eq.s32.totalorder %s14, 0
    %p88 = por %p86, %p87
    %p89 = scmp.le.s32.totalorder 1, %s8
    %p90 = scmp.lt.s32.totalorder %s8, 3
    %p91 = pnand %p89, %p90
    %p92 = pneg %p91
    // Predicated region
    $region9: #{encoder_forward.3} parent=5 // pred_check
      _
    $region10: #{encoder_forward.3} parent=5 // pred_check_branch
      %94 = sbr.rel (%p91) target = $region12
    $region11: #{encoder_forward.3} parent=5 // pred_region
      %s95 = ssub.s32 %s8, 1
      // Predicated region
      $region13: #{encoder_forward.3} parent=11 // pred_check
        %p96 = pneg %p55
      $region14: #{encoder_forward.3} parent=11 // pred_check_branch
        %98 = sbr.rel (%p96) target = $region16
      $region15: #{encoder_forward.3} parent=11 // pred_region
        _
      $region16: #{encoder_forward.3} parent=11 // pred_fallthru
        _
    $region12: #{encoder_forward.3} parent=5 // pred_fallthru
      _
    %p99 = scmp.lt.s32.totalorder %s8, 2
    // Predicated region
    $region17: #{encoder_forward.3} parent=5 // pred_check
      %p100 = pneg %p99
    $region18: #{encoder_forward.3} parent=5 // pred_check_branch
      %102 = sbr.rel (%p100) target = $region20
    $region19: #{encoder_forward.3} parent=5 // pred_region
      // Predicated region
      $region21: #{encoder_forward.3} parent=19 // pred_check
        %p103 = pneg %p28
      $region22: #{encoder_forward.3} parent=19 // pred_check_branch
        %105 = sbr.rel (%p103) target = $region24
      $region23: #{encoder_forward.3} parent=19 // pred_region
        %s106 = smul.u32 32, %s8
        %p107 = scmp.lt.s32.totalorder %s106, 63
        %s108 = scalar_select %p107, %s106, 63
        %s109 = smul.addr %s108, 8
        %s110 = scalar_lea.vmem %s0, %s109
        %s111 = smul.u32 32, %s8
      $region24: #{encoder_forward.3} parent=19 // pred_fallthru
        _
    $region20: #{encoder_forward.3} parent=5 // pred_fallthru
      _
    %p112 = scmp.le.s32.totalorder 1, %s8
    %p113 = scmp.lt.s32.totalorder %s8, 3
    %p114 = pnand %p112, %p113
    %p115 = pneg %p114
    // Predicated region
    $region25: #{encoder_forward.3} parent=5 // pred_check
      _
    $region26: #{encoder_forward.3} parent=5 // pred_check_branch
      %117 = sbr.rel (%p114) target = $region28
    $region27: #{encoder_forward.3} parent=5 // pred_region
      %s118 = ssub.s32 %s8, 1
      %s119 = smul.u32 32, %s13
      %p120 = scmp.lt.s32.totalorder %s119, 63
      %s121 = scalar_select %p120, %s119, 63
      %s122 = smul.addr %s121, 8
      %s123 = scalar_lea.vmem %s0, %s122
      %p124 = pneg %p34
      %p125 = pneg %p31
      %p126 = pneg %p55
      %p127 = pneg %p52
      %p128 = pneg %p81
      %p129 = pneg %p78
      %s130 = smul.u32 32, %s13
      %p131 = scmp.lt.s32.totalorder %s130, 63
      %s132 = scalar_select %p131, %s130, 63
      %s133 = smul.addr %s132, 8
      %s134 = scalar_lea.vmem %s2, %s133
      %s135 = smul.u32 32, %s13
      %p136 = scmp.lt.s32.totalorder %s135, 63
      %s137 = scalar_select %p136, %s135, 63
      %s138 = smul.addr %s137, 8
      %s139 = scalar_lea.vmem %s0, %s138
      %s140 = smul.u32 32, %s13
      %s141 = smul.u32 32, %s13
      %p142 = scmp.lt.s32.totalorder %s141, 63
      %s143 = scalar_select %p142, %s141, 63
      %s144 = smul.addr %s143, 8
      %s145 = scalar_lea.vmem %s2, %s144
      %s146 = smul.u32 32, %s13
      %v147 = vld [vmem:[%s1] sm:$0x3]
      %v148 = vld [vmem:[%s139] sm:$0xff]
      %v149 = vld [vmem:[%s139 + $0x8] sm:$0xff]
      %v150 = vld [vmem:[%s139 + $0x10] sm:$0xff]
      %v151 = vld [vmem:[%s139 + $0x18] sm:$0xff]
      %v152 = vld [vmem:[%s139 + $0x20] sm:$0xff]
      %v153 = vld [vmem:[%s139 + $0x28] sm:$0xff]
      %v154 = vld [vmem:[%s139 + $0x30] sm:$0xff]
      %v155 = vld [vmem:[%s139 + $0x38] sm:$0xff]
      %v156 = vld [vmem:[%s139 + $0x40] sm:$0xff]
      %v157 = vld [vmem:[%s139 + $0x48] sm:$0xff]
      %v158 = vld [vmem:[%s139 + $0x50] sm:$0xff]
      %v159 = vld [vmem:[%s139 + $0x58] sm:$0xff]
      %v160 = vld [vmem:[%s139 + $0x60] sm:$0xff]
      %v161 = vld [vmem:[%s139 + $0x68] sm:$0xff]
      %v162 = vld [vmem:[%s139 + $0x70] sm:$0xff]
      %v163 = vld [vmem:[%s139 + $0x78] sm:$0xff]
      %v164 = vld [vmem:[%s139 + $0x80] sm:$0xff]
      %v165 = vld [vmem:[%s139 + $0x88] sm:$0xff]
      %v166 = vld [vmem:[%s139 + $0x90] sm:$0xff]
      %v167 = vld [vmem:[%s139 + $0x98] sm:$0xff]
      %v168 = vld [vmem:[%s139 + $0xa0] sm:$0xff]
      %v169 = vld [vmem:[%s139 + $0xa8] sm:$0xff]
      %v170 = vld [vmem:[%s139 + $0xb0] sm:$0xff]
      %v171 = vld [vmem:[%s139 + $0xb8] sm:$0xff]
      %v172 = vld [vmem:[%s139 + $0xc0] sm:$0xff]
      %v173 = vld [vmem:[%s139 + $0xc8] sm:$0xff]
      %v174 = vld [vmem:[%s139 + $0xd0] sm:$0xff]
      %v175 = vld [vmem:[%s139 + $0xd8] sm:$0xff]
      %v176 = vld [vmem:[%s139 + $0xe0] sm:$0xff]
      %v177 = vld [vmem:[%s139 + $0xe8] sm:$0xff]
      %v178 = vld [vmem:[%s139 + $0xf0] sm:$0xff]
      %v179 = vld [vmem:[%s139 + $0xf8] sm:$0xff]
      %v180 = vlaneseq
      %v181 = vshrl.u32 %v180, 7
      %v182 = vsub.s32 0, %v181
      %v183 = vrot.slane %v147, %v182
      %v184 = vmul.f32 %v148, %v183
      %v185 = vmul.f32 %v149, %v183
      %v186 = vmul.f32 %v150, %v183
      %v187 = vmul.f32 %v151, %v183
      %v188 = vmul.f32 %v152, %v183
      %v189 = vmul.f32 %v153, %v183
      %v190 = vmul.f32 %v154, %v183
      %v191 = vmul.f32 %v155, %v183
      %v192 = vmul.f32 %v156, %v183
      %v193 = vmul.f32 %v157, %v183
      %v194 = vmul.f32 %v158, %v183
      %v195 = vmul.f32 %v159, %v183
      %v196 = vmul.f32 %v160, %v183
      %v197 = vmul.f32 %v161, %v183
      %v198 = vmul.f32 %v162, %v183
      %v199 = vmul.f32 %v163, %v183
      %v200 = vmul.f32 %v164, %v183
      %v201 = vmul.f32 %v165, %v183
      %v202 = vmul.f32 %v166, %v183
      %v203 = vmul.f32 %v167, %v183
      %v204 = vmul.f32 %v168, %v183
      %v205 = vmul.f32 %v169, %v183
      %v206 = vmul.f32 %v170, %v183
      %v207 = vmul.f32 %v171, %v183
      %v208 = vmul.f32 %v172, %v183
      %v209 = vmul.f32 %v173, %v183
      %v210 = vmul.f32 %v174, %v183
      %v211 = vmul.f32 %v175, %v183
      %v212 = vmul.f32 %v176, %v183
      %v213 = vmul.f32 %v177, %v183
      %v214 = vmul.f32 %v178, %v183
      %v215 = vmul.f32 %v179, %v183
      %v216 = vlaneseq
      %v217 = vshrl.u32 %v216, 7
      %v218 = vsub.s32 1, %v217
      %v219 = vrot.slane %v147, %v218
      %v220 = vadd.f32 %v184, %v219
      %v221 = vadd.f32 %v185, %v219
      %v222 = vadd.f32 %v186, %v219
      %v223 = vadd.f32 %v187, %v219
      %v224 = vadd.f32 %v188, %v219
      %v225 = vadd.f32 %v189, %v219
      %v226 = vadd.f32 %v190, %v219
      %v227 = vadd.f32 %v191, %v219
      %v228 = vadd.f32 %v192, %v219
      %v229 = vadd.f32 %v193, %v219
      %v230 = vadd.f32 %v194, %v219
      %v231 = vadd.f32 %v195, %v219
      %v232 = vadd.f32 %v196, %v219
      %v233 = vadd.f32 %v197, %v219
      %v234 = vadd.f32 %v198, %v219
      %v235 = vadd.f32 %v199, %v219
      %v236 = vadd.f32 %v200, %v219
      %v237 = vadd.f32 %v201, %v219
      %v238 = vadd.f32 %v202, %v219
      %v239 = vadd.f32 %v203, %v219
      %v240 = vadd.f32 %v204, %v219
      %v241 = vadd.f32 %v205, %v219
      %v242 = vadd.f32 %v206, %v219
      %v243 = vadd.f32 %v207, %v219
      %v244 = vadd.f32 %v208, %v219
      %v245 = vadd.f32 %v209, %v219
      %v246 = vadd.f32 %v210, %v219
      %v247 = vadd.f32 %v211, %v219
      %v248 = vadd.f32 %v212, %v219
      %v249 = vadd.f32 %v213, %v219
      %v250 = vadd.f32 %v214, %v219
      %v251 = vadd.f32 %v215, %v219
      %v252 = vmul.f32 %v220, 0.01
      %v253 = vmul.f32 %v221, 0.01
      %v254 = vmul.f32 %v222, 0.01
      %v255 = vmul.f32 %v223, 0.01
      %v256 = vmul.f32 %v224, 0.01
      %v257 = vmul.f32 %v225, 0.01
      %v258 = vmul.f32 %v226, 0.01
      %v259 = vmul.f32 %v227, 0.01
      %v260 = vmul.f32 %v228, 0.01
      %v261 = vmul.f32 %v229, 0.01
      %v262 = vmul.f32 %v230, 0.01
      %v263 = vmul.f32 %v231, 0.01
      %v264 = vmul.f32 %v232, 0.01
      %v265 = vmul.f32 %v233, 0.01
      %v266 = vmul.f32 %v234, 0.01
      %v267 = vmul.f32 %v235, 0.01
      %v268 = vmul.f32 %v236, 0.01
      %v269 = vmul.f32 %v237, 0.01
      %v270 = vmul.f32 %v238, 0.01
      %v271 = vmul.f32 %v239, 0.01
      %v272 = vmul.f32 %v240, 0.01
      %v273 = vmul.f32 %v241, 0.01
      %v274 = vmul.f32 %v242, 0.01
      %v275 = vmul.f32 %v243, 0.01
      %v276 = vmul.f32 %v244, 0.01
      %v277 = vmul.f32 %v245, 0.01
      %v278 = vmul.f32 %v246, 0.01
      %v279 = vmul.f32 %v247, 0.01
      %v280 = vmul.f32 %v248, 0.01
      %v281 = vmul.f32 %v249, 0.01
      %v282 = vmul.f32 %v250, 0.01
      %v283 = vmul.f32 %v251, 0.01
      %v284 = vmax.f32 %v220, %v252
      %v285 = vmax.f32 %v221, %v253
      %v286 = vmax.f32 %v222, %v254
      %v287 = vmax.f32 %v223, %v255
      %v288 = vmax.f32 %v224, %v256
      %v289 = vmax.f32 %v225, %v257
      %v290 = vmax.f32 %v226, %v258
      %v291 = vmax.f32 %v227, %v259
      %v292 = vmax.f32 %v228, %v260
      %v293 = vmax.f32 %v229, %v261
      %v294 = vmax.f32 %v230, %v262
      %v295 = vmax.f32 %v231, %v263
      %v296 = vmax.f32 %v232, %v264
      %v297 = vmax.f32 %v233, %v265
      %v298 = vmax.f32 %v234, %v266
      %v299 = vmax.f32 %v235, %v267
      %v300 = vmax.f32 %v236, %v268
      %v301 = vmax.f32 %v237, %v269
      %v302 = vmax.f32 %v238, %v270
      %v303 = vmax.f32 %v239, %v271
      %v304 = vmax.f32 %v240, %v272
      %v305 = vmax.f32 %v241, %v273
      %v306 = vmax.f32 %v242, %v274
      %v307 = vmax.f32 %v243, %v275
      %v308 = vmax.f32 %v244, %v276
      %v309 = vmax.f32 %v245, %v277
      %v310 = vmax.f32 %v246, %v278
      %v311 = vmax.f32 %v247, %v279
      %v312 = vmax.f32 %v248, %v280
      %v313 = vmax.f32 %v249, %v281
      %v314 = vmax.f32 %v250, %v282
      %v315 = vmax.f32 %v251, %v283
      %316 = vst [vmem:[%s145] sm:$0xff] %v284
      %317 = vst [vmem:[%s145 + $0x8] sm:$0xff] %v285
      %318 = vst [vmem:[%s145 + $0x10] sm:$0xff] %v286
      %319 = vst [vmem:[%s145 + $0x18] sm:$0xff] %v287
      %320 = vst [vmem:[%s145 + $0x20] sm:$0xff] %v288
      %321 = vst [vmem:[%s145 + $0x28] sm:$0xff] %v289
      %322 = vst [vmem:[%s145 + $0x30] sm:$0xff] %v290
      %323 = vst [vmem:[%s145 + $0x38] sm:$0xff] %v291
      %324 = vst [vmem:[%s145 + $0x40] sm:$0xff] %v292
      %325 = vst [vmem:[%s145 + $0x48] sm:$0xff] %v293
      %326 = vst [vmem:[%s145 + $0x50] sm:$0xff] %v294
      %327 = vst [vmem:[%s145 + $0x58] sm:$0xff] %v295
      %328 = vst [vmem:[%s145 + $0x60] sm:$0xff] %v296
      %329 = vst [vmem:[%s145 + $0x68] sm:$0xff] %v297
      %330 = vst [vmem:[%s145 + $0x70] sm:$0xff] %v298
      %331 = vst [vmem:[%s145 + $0x78] sm:$0xff] %v299
      %332 = vst [vmem:[%s145 + $0x80] sm:$0xff] %v300
      %333 = vst [vmem:[%s145 + $0x88] sm:$0xff] %v301
      %334 = vst [vmem:[%s145 + $0x90] sm:$0xff] %v302
      %335 = vst [vmem:[%s145 + $0x98] sm:$0xff] %v303
      %336 = vst [vmem:[%s145 + $0xa0] sm:$0xff] %v304
      %337 = vst [vmem:[%s145 + $0xa8] sm:$0xff] %v305
      %338 = vst [vmem:[%s145 + $0xb0] sm:$0xff] %v306
      %339 = vst [vmem:[%s145 + $0xb8] sm:$0xff] %v307
      %340 = vst [vmem:[%s145 + $0xc0] sm:$0xff] %v308
      %341 = vst [vmem:[%s145 + $0xc8] sm:$0xff] %v309
      %342 = vst [vmem:[%s145 + $0xd0] sm:$0xff] %v310
      %343 = vst [vmem:[%s145 + $0xd8] sm:$0xff] %v311
      %344 = vst [vmem:[%s145 + $0xe0] sm:$0xff] %v312
      %345 = vst [vmem:[%s145 + $0xe8] sm:$0xff] %v313
      %346 = vst [vmem:[%s145 + $0xf0] sm:$0xff] %v314
      %347 = vst [vmem:[%s145 + $0xf8] sm:$0xff] %v315
      %s348 = smul.u32 32, %s13
      %p349 = scmp.lt.s32.totalorder %s348, 63
      %s350 = scalar_select %p349, %s348, 63
      %s351 = smul.addr %s350, 8
      %s352 = scalar_lea.vmem %s2, %s351
      // Predicated region
      $region29: #{encoder_forward.3} parent=27 // pred_check
        %p353 = pneg %p78
      $region30: #{encoder_forward.3} parent=27 // pred_check_branch
        %355 = sbr.rel (%p353) target = $region32
      $region31: #{encoder_forward.3} parent=27 // pred_region
        %s356 = smul.u32 32, %s13
      $region32: #{encoder_forward.3} parent=27 // pred_fallthru
        _
    $region28: #{encoder_forward.3} parent=5 // pred_fallthru
      _
    %p357 = scmp.le.s32.totalorder 2, %s8
    // Predicated region
    $region33: #{encoder_forward.3} parent=5 // pred_check
      %p358 = pneg %p357
    $region34: #{encoder_forward.3} parent=5 // pred_check_branch
      %360 = sbr.rel (%p358) target = $region36
    $region35: #{encoder_forward.3} parent=5 // pred_region
      %s361 = ssub.s32 %s8, 2
      // Predicated region
      $region37: #{encoder_forward.3} parent=35 // pred_check
        %p362 = pneg %p84
      $region38: #{encoder_forward.3} parent=35 // pred_check_branch
        %364 = sbr.rel (%p362) target = $region40
      $region39: #{encoder_forward.3} parent=35 // pred_region
        %s365 = smul.u32 32, %s14
        %p366 = scmp.lt.s32.totalorder %s365, 63
        %s367 = scalar_select %p366, %s365, 63
        %s368 = smul.addr %s367, 8
        %s369 = scalar_lea.vmem %s2, %s368
      $region40: #{encoder_forward.3} parent=35 // pred_fallthru
        _
    $region36: #{encoder_forward.3} parent=5 // pred_fallthru
      _
  $region6: #{encoder_forward.3} parent=0 // loop_footer
    %s12 = sadd.s32 1, %s8
  $region7: #{encoder_forward.3} parent=0 // loop_footer_branch
    %7 = sbr.rel target = $region3
  $region8: #{encoder_forward.3} parent=0 // loop_exit
    _

// kernel: encoder_forward.2
$region0: #{encoder_forward.2}
  #allocation0 [shape = 'u32[]', space=smem, size = 0x4, offset = 0x4, fixed_abs, tag = 'smem constant byte address 0x4 - core index']
  #allocation1 [shape = 'u32[144,128]{1,0:T(1,128)}', space=vmem, size = 0x12000, scoped, tag = 'internal scratch']
  %s0 = inlined_call_operand.vmem [shape: bf16[512,576], index: 0, kind: input, shape index: {}]
  %s1 = inlined_call_operand.vmem [shape: bf16[576,128], index: 1, kind: input, shape index: {}]
  %s2 = inlined_call_operand.vmem [shape: f32[512,128], index: 2, kind: output, shape index: {0}]
  %s3 = inlined_call_operand.vmem [shape: f32[2,2,128], index: 3, kind: output, shape index: {1}]
  %4 = xla_tuple %s2, %s3
  %s5 = sld [smem:[#allocation0]]
  $region49: #{encoder_forward.2} parent=0
    _
  %s7 = ssub.s32 1, %s5
  %s8 = scalar_select 0, %s7, %s5
  loop: start=0, step=1, limit=4
  $region2: #{encoder_forward.2} parent=0 // loop_pre_header
    _
  $region3: #{encoder_forward.2} parent=0 // loop_header
    %s10 = sphi 0, %s14
    %p11 = scmp.ge.s32.totalorder %s10, 4
    %s20 = sphi 0, %s22
    %s23 = sphi 0, %s20
    %s24 = sphi 0, %s23
    %s40 = sphi 0, %s24
    %s44 = sphi 0, %s44
    %s46 = sphi 0, %s44
    %s47 = sphi 0, %s46
    %s61 = sphi 0, %s47
    %s67 = sphi 0, %s69
    %s70 = sphi 0, %s67
    %s71 = sphi 0, %s70
    %s87 = sphi 0, %s71
    %s93 = sphi 0, %s95
    %s96 = sphi 0, %s93
    %s97 = sphi 0, %s96
    %s113 = sphi 0, %s97
  $region4: #{encoder_forward.2} parent=0 // loop_header_branch
    %13 = sbr.rel (%p11) target = $region8
  $region5: #{encoder_forward.2} parent=0 // loop_body
    %s15 = ssub.s32 %s10, 1
    %s16 = ssub.s32 %s10, 2
    %s17 = sadd.s32 %s10, 1
    %s18 = ssub.s32 %s10, %s17
    %p19 = scmp.eq.s32.totalorder %s18, 0
    %s21 = sadd.s32 %s20, 1
    %s22 = scalar_select %p19, %s20, %s21
    %p25 = pneg %p19
    %p26 = scmp.eq.s32.totalorder %s10, 1
    %p27 = por %p25, %p26
    %p28 = scmp.ne.s32.totalorder %s20, %s23
    %p29 = scmp.eq.s32.totalorder %s10, 0
    %p30 = por %p28, %p29
    %p31 = scmp.ne.s32.totalorder %s20, %s23
    %p32 = scmp.eq.s32.totalorder %s15, 1
    %p33 = por %p31, %p32
    %p34 = scmp.ne.s32.totalorder %s23, %s24
    %p35 = scmp.eq.s32.totalorder %s15, 0
    %p36 = por %p34, %p35
    %p37 = scmp.ne.s32.totalorder %s23, %s24
    %p38 = scmp.eq.s32.totalorder %s16, 1
    %p39 = por %p37, %p38
    %p41 = scmp.ne.s32.totalorder %s24, %s40
    %p42 = scmp.eq.s32.totalorder %s16, 0
    %p43 = por %p41, %p42
    %s45 = sadd.s32 %s44, 1
    %p48 = scmp.eq.s32.totalorder %s10, 1
    %p49 = scmp.ne.s32.totalorder %s44, %s46
    %p50 = scmp.eq.s32.totalorder %s10, 0
    %p51 = por %p49, %p50
    %p52 = scmp.ne.s32.totalorder %s44, %s46
    %p53 = scmp.eq.s32.totalorder %s15, 1
    %p54 = por %p52, %p53
    %p55 = scmp.ne.s32.totalorder %s46, %s47
    %p56 = scmp.eq.s32.totalorder %s15, 0
    %p57 = por %p55, %p56
    %p58 = scmp.ne.s32.totalorder %s46, %s47
    %p59 = scmp.eq.s32.totalorder %s16, 1
    %p60 = por %p58, %p59
    %p62 = scmp.ne.s32.totalorder %s47, %s61
    %p63 = scmp.eq.s32.totalorder %s16, 0
    %p64 = por %p62, %p63
    %s65 = ssub.s32 %s10, %s17
    %p66 = scmp.eq.s32.totalorder %s65, 0
    %s68 = sadd.s32 %s67, 1
    %s69 = scalar_select %p66, %s67, %s68
    %p72 = pneg %p66
    %p73 = scmp.eq.s32.totalorder %s10, 1
    %p74 = por %p72, %p73
    %p75 = scmp.ne.s32.totalorder %s67, %s70
    %p76 = scmp.eq.s32.totalorder %s10, 0
    %p77 = por %p75, %p76
    %p78 = scmp.ne.s32.totalorder %s67, %s70
    %p79 = scmp.eq.s32.totalorder %s15, 1
    %p80 = por %p78, %p79
    %p81 = scmp.ne.s32.totalorder %s70, %s71
    %p82 = scmp.eq.s32.totalorder %s15, 0
    %p83 = por %p81, %p82
    %p84 = scmp.ne.s32.totalorder %s70, %s71
    %p85 = scmp.eq.s32.totalorder %s16, 1
    %p86 = por %p84, %p85
    %p88 = scmp.ne.s32.totalorder %s71, %s87
    %p89 = scmp.eq.s32.totalorder %s16, 0
    %p90 = por %p88, %p89
    %s91 = ssub.s32 %s10, %s17
    %p92 = scmp.eq.s32.totalorder %s91, 0
    %s94 = sadd.s32 %s93, 1
    %s95 = scalar_select %p92, %s93, %s94
    %p98 = pneg %p92
    %p99 = scmp.eq.s32.totalorder %s10, 1
    %p100 = por %p98, %p99
    %p101 = scmp.ne.s32.totalorder %s93, %s96
    %p102 = scmp.eq.s32.totalorder %s10, 0
    %p103 = por %p101, %p102
    %p104 = scmp.ne.s32.totalorder %s93, %s96
    %p105 = scmp.eq.s32.totalorder %s15, 1
    %p106 = por %p104, %p105
    %p107 = scmp.ne.s32.totalorder %s96, %s97
    %p108 = scmp.eq.s32.totalorder %s15, 0
    %p109 = por %p107, %p108
    %p110 = scmp.ne.s32.totalorder %s96, %s97
    %p111 = scmp.eq.s32.totalorder %s16, 1
    %p112 = por %p110, %p111
    %p114 = scmp.ne.s32.totalorder %s97, %s113
    %p115 = scmp.eq.s32.totalorder %s16, 0
    %p116 = por %p114, %p115
    %p117 = scmp.le.s32.totalorder 1, %s10
    %p118 = scmp.lt.s32.totalorder %s10, 3
    %p119 = pnand %p117, %p118
    %p120 = pneg %p119
    // Predicated region
    $region9: #{encoder_forward.2} parent=5 // pred_check
      _
    $region10: #{encoder_forward.2} parent=5 // pred_check_branch
      %122 = sbr.rel (%p119) target = $region12
    $region11: #{encoder_forward.2} parent=5 // pred_region
      %s123 = ssub.s32 %s10, 1
      // Predicated region
      $region13: #{encoder_forward.2} parent=11 // pred_check
        %p124 = pneg %p57
      $region14: #{encoder_forward.2} parent=11 // pred_check_branch
        %126 = sbr.rel (%p124) target = $region16
      $region15: #{encoder_forward.2} parent=11 // pred_region
        _
      $region16: #{encoder_forward.2} parent=11 // pred_fallthru
        _
    $region12: #{encoder_forward.2} parent=5 // pred_fallthru
      _
    %p127 = scmp.lt.s32.totalorder %s10, 2
    // Predicated region
    $region17: #{encoder_forward.2} parent=5 // pred_check
      %p128 = pneg %p127
    $region18: #{encoder_forward.2} parent=5 // pred_check_branch
      %130 = sbr.rel (%p128) target = $region20
    $region19: #{encoder_forward.2} parent=5 // pred_region
      // Predicated region
      $region21: #{encoder_forward.2} parent=19 // pred_check
        %p131 = pneg %p30
      $region22: #{encoder_forward.2} parent=19 // pred_check_branch
        %133 = sbr.rel (%p131) target = $region24
      $region23: #{encoder_forward.2} parent=19 // pred_region
        %s134 = smul.u32 32, %s10
        %p135 = scmp.lt.s32.totalorder %s134, 63
        %s136 = scalar_select %p135, %s134, 63
        %s137 = smul.addr %s136, 5
        %s138 = smul.addr %s137, 4
        %s139 = scalar_lea.vmem %s0, %s138
        %s140 = smul.u32 32, %s10
      $region24: #{encoder_forward.2} parent=19 // pred_fallthru
        _
    $region20: #{encoder_forward.2} parent=5 // pred_fallthru
      _
    %p141 = scmp.le.s32.totalorder 1, %s10
    %p142 = scmp.lt.s32.totalorder %s10, 3
    %p143 = pnand %p141, %p142
    %p144 = pneg %p143
    // Predicated region
    $region25: #{encoder_forward.2} parent=5 // pred_check
      _
    $region26: #{encoder_forward.2} parent=5 // pred_check_branch
      %146 = sbr.rel (%p143) target = $region28
    $region27: #{encoder_forward.2} parent=5 // pred_region
      %s147 = ssub.s32 %s10, 1
      %s148 = smul.u32 32, %s15
      %p149 = scmp.lt.s32.totalorder %s148, 63
      %s150 = scalar_select %p149, %s148, 63
      %s151 = smul.addr %s150, 5
      %s152 = smul.addr %s151, 4
      %s153 = scalar_lea.vmem %s0, %s152
      %p154 = pneg %p36
      %p155 = pneg %p33
      %p156 = pneg %p57
      %p157 = pneg %p54
      %p158 = pneg %p83
      %p159 = pneg %p80
      %s160 = smul.u32 32, %s15
      %p161 = scmp.lt.s32.totalorder %s160, 63
      %s162 = scalar_select %p161, %s160, 63
      %s163 = smul.addr %s162, 8
      %s164 = scalar_lea.vmem %s2, %s163
      %p165 = pneg %p109
      %p166 = pneg %p106
      %p167 = scmp.lt.s32.totalorder %s15, 1
      %s168 = scalar_select %p167, %s15, 1
      %s169 = smul.addr %s168, 2
      %s170 = scalar_lea.vmem %s3, %s169
      %s171 = smul.u32 32, %s15
      %p172 = scmp.lt.s32.totalorder %s171, 63
      %s173 = scalar_select %p172, %s171, 63
      %s174 = smul.addr %s173, 5
      %s175 = smul.addr %s174, 4
      %s176 = scalar_lea.vmem %s0, %s175
      %s177 = smul.u32 32, %s15
      %s178 = smul.u32 32, %s15
      %p179 = scmp.lt.s32.totalorder %s178, 63
      %s180 = scalar_select %p179, %s178, 63
      %s181 = smul.addr %s180, 8
      %s182 = scalar_lea.vmem %s2, %s181
      %s183 = smul.u32 32, %s15
      %p184 = scmp.lt.s32.totalorder %s15, 1
      %s185 = scalar_select %p184, %s15, 1
      %s186 = smul.addr %s185, 2
      %s187 = scalar_lea.vmem %s3, %s186
      %v189 = vld [vmem:[%s176] sm:$0xff]
      %v190 = vld [vmem:[%s176 + $0x8] sm:$0xff]
      %v191 = vld [vmem:[%s176 + $0x10] sm:$0xf]
      %v192 = vld [vmem:[%s176 + $0x14] sm:$0xff]
      %v193 = vld [vmem:[%s176 + $0x1c] sm:$0xff]
      %v194 = vld [vmem:[%s176 + $0x24] sm:$0xf]
      %v195 = vld [vmem:[%s176 + $0x28] sm:$0xff]
      %v196 = vld [vmem:[%s176 + $0x30] sm:$0xff]
      %v197 = vld [vmem:[%s176 + $0x38] sm:$0xf]
      %v198 = vld [vmem:[%s176 + $0x3c] sm:$0xff]
      %v199 = vld [vmem:[%s176 + $0x44] sm:$0xff]
      %v200 = vld [vmem:[%s176 + $0x4c] sm:$0xf]
      %v201 = vld [vmem:[%s176 + $0x50] sm:$0xff]
      %v202 = vld [vmem:[%s176 + $0x58] sm:$0xff]
      %v203 = vld [vmem:[%s176 + $0x60] sm:$0xf]
      %v204 = vld [vmem:[%s176 + $0x64] sm:$0xff]
      %v205 = vld [vmem:[%s176 + $0x6c] sm:$0xff]
      %v206 = vld [vmem:[%s176 + $0x74] sm:$0xf]
      %v207 = vld [vmem:[%s176 + $0x78] sm:$0xff]
      %v208 = vld [vmem:[%s176 + $0x80] sm:$0xff]
      %v209 = vld [vmem:[%s176 + $0x88] sm:$0xf]
      %v210 = vld [vmem:[%s176 + $0x8c] sm:$0xff]
      %v211 = vld [vmem:[%s176 + $0x94] sm:$0xff]
      %v212 = vld [vmem:[%s176 + $0x9c] sm:$0xf]
      %v213 = vld [vmem:[%s176 + $0xa0] sm:$0xff]
      %v214 = vld [vmem:[%s176 + $0xa8] sm:$0xff]
      %v215 = vld [vmem:[%s176 + $0xb0] sm:$0xf]
      %v216 = vld [vmem:[%s176 + $0xb4] sm:$0xff]
      %v217 = vld [vmem:[%s176 + $0xbc] sm:$0xff]
      %v218 = vld [vmem:[%s176 + $0xc4] sm:$0xf]
      %v219 = vld [vmem:[%s176 + $0xc8] sm:$0xff]
      %v220 = vld [vmem:[%s176 + $0xd0] sm:$0xff]
      %v221 = vld [vmem:[%s176 + $0xd8] sm:$0xf]
      %v222 = vld [vmem:[%s176 + $0xdc] sm:$0xff]
      %v223 = vld [vmem:[%s176 + $0xe4] sm:$0xff]
      %v224 = vld [vmem:[%s176 + $0xec] sm:$0xf]
      %v225 = vld [vmem:[%s176 + $0xf0] sm:$0xff]
      %v226 = vld [vmem:[%s176 + $0xf8] sm:$0xff]
      %v227 = vld [vmem:[%s176 + $0x100] sm:$0xf]
      %v228 = vld [vmem:[%s176 + $0x104] sm:$0xff]
      %v229 = vld [vmem:[%s176 + $0x10c] sm:$0xff]
      %v230 = vld [vmem:[%s176 + $0x114] sm:$0xf]
      %v231 = vld [vmem:[%s176 + $0x118] sm:$0xff]
      %v232 = vld [vmem:[%s176 + $0x120] sm:$0xff]
      %v233 = vld [vmem:[%s176 + $0x128] sm:$0xf]
      %v234 = vld [vmem:[%s176 + $0x12c] sm:$0xff]
      %v235 = vld [vmem:[%s176 + $0x134] sm:$0xff]
      %v236 = vld [vmem:[%s176 + $0x13c] sm:$0xf]
      %v237 = vld [vmem:[%s176 + $0x140] sm:$0xff]
      %v238 = vld [vmem:[%s176 + $0x148] sm:$0xff]
      %v239 = vld [vmem:[%s176 + $0x150] sm:$0xf]
      %v240 = vld [vmem:[%s176 + $0x154] sm:$0xff]
      %v241 = vld [vmem:[%s176 + $0x15c] sm:$0xff]
      %v242 = vld [vmem:[%s176 + $0x164] sm:$0xf]
      %v243 = vld [vmem:[%s176 + $0x168] sm:$0xff]
      %v244 = vld [vmem:[%s176 + $0x170] sm:$0xff]
      %v245 = vld [vmem:[%s176 + $0x178] sm:$0xf]
      %v246 = vld [vmem:[%s176 + $0x17c] sm:$0xff]
      %v247 = vld [vmem:[%s176 + $0x184] sm:$0xff]
      %v248 = vld [vmem:[%s176 + $0x18c] sm:$0xf]
      %v249 = vld [vmem:[%s176 + $0x190] sm:$0xff]
      %v250 = vld [vmem:[%s176 + $0x198] sm:$0xff]
      %v251 = vld [vmem:[%s176 + $0x1a0] sm:$0xf]
      %v252 = vld [vmem:[%s176 + $0x1a4] sm:$0xff]
      %v253 = vld [vmem:[%s176 + $0x1ac] sm:$0xff]
      %v254 = vld [vmem:[%s176 + $0x1b4] sm:$0xf]
      %v255 = vld [vmem:[%s176 + $0x1b8] sm:$0xff]
      %v256 = vld [vmem:[%s176 + $0x1c0] sm:$0xff]
      %v257 = vld [vmem:[%s176 + $0x1c8] sm:$0xf]
      %v258 = vld [vmem:[%s176 + $0x1cc] sm:$0xff]
      %v259 = vld [vmem:[%s176 + $0x1d4] sm:$0xff]
      %v260 = vld [vmem:[%s176 + $0x1dc] sm:$0xf]
      %v261 = vld [vmem:[%s176 + $0x1e0] sm:$0xff]
      %v262 = vld [vmem:[%s176 + $0x1e8] sm:$0xff]
      %v263 = vld [vmem:[%s176 + $0x1f0] sm:$0xf]
      %v264 = vld [vmem:[%s176 + $0x1f4] sm:$0xff]
      %v265 = vld [vmem:[%s176 + $0x1fc] sm:$0xff]
      %v266 = vld [vmem:[%s176 + $0x204] sm:$0xf]
      %v267 = vld [vmem:[%s176 + $0x208] sm:$0xff]
      %v268 = vld [vmem:[%s176 + $0x210] sm:$0xff]
      %v269 = vld [vmem:[%s176 + $0x218] sm:$0xf]
      %v270 = vld [vmem:[%s176 + $0x21c] sm:$0xff]
      %v271 = vld [vmem:[%s176 + $0x224] sm:$0xff]
      %v272 = vld [vmem:[%s176 + $0x22c] sm:$0xf]
      %v273 = vld [vmem:[%s176 + $0x230] sm:$0xff]
      %v274 = vld [vmem:[%s176 + $0x238] sm:$0xff]
      %v275 = vld [vmem:[%s176 + $0x240] sm:$0xf]
      %v276 = vld [vmem:[%s176 + $0x244] sm:$0xff]
      %v277 = vld [vmem:[%s176 + $0x24c] sm:$0xff]
      %v278 = vld [vmem:[%s176 + $0x254] sm:$0xf]
      %v279 = vld [vmem:[%s176 + $0x258] sm:$0xff]
      %v280 = vld [vmem:[%s176 + $0x260] sm:$0xff]
      %v281 = vld [vmem:[%s176 + $0x268] sm:$0xf]
      %v282 = vld [vmem:[%s176 + $0x26c] sm:$0xff]
      %v283 = vld [vmem:[%s176 + $0x274] sm:$0xff]
      %v284 = vld [vmem:[%s176 + $0x27c] sm:$0xf]
      %v285 = vld [vmem:[%s1] sm:$0xf]
      %v286 = vld [vmem:[%s1 + $0x4] sm:$0xf]
      %v287 = vld [vmem:[%s1 + $0x8] sm:$0xf]
      %v288 = vld [vmem:[%s1 + $0xc] sm:$0xf]
      %v289 = vld [vmem:[%s1 + $0x10] sm:$0xf]
      %v290 = vld [vmem:[%s1 + $0x14] sm:$0xf]
      %v291 = vld [vmem:[%s1 + $0x18] sm:$0xf]
      %v292 = vld [vmem:[%s1 + $0x1c] sm:$0xf]
      %v293 = vld [vmem:[%s1 + $0x20] sm:$0xf]
      %v294 = vld [vmem:[%s1 + $0x24] sm:$0xf]
      %v295 = vld [vmem:[%s1 + $0x28] sm:$0xf]
      %v296 = vld [vmem:[%s1 + $0x2c] sm:$0xf]
      %v297 = vld [vmem:[%s1 + $0x30] sm:$0xf]
      %v298 = vld [vmem:[%s1 + $0x34] sm:$0xf]
      %v299 = vld [vmem:[%s1 + $0x38] sm:$0xf]
      %v300 = vld [vmem:[%s1 + $0x3c] sm:$0xf]
      %v301 = vld [vmem:[%s1 + $0x40] sm:$0xf]
      %v302 = vld [vmem:[%s1 + $0x44] sm:$0xf]
      %v303 = vld [vmem:[%s1 + $0x48] sm:$0xf]
      %v304 = vld [vmem:[%s1 + $0x4c] sm:$0xf]
      %v305 = vld [vmem:[%s1 + $0x50] sm:$0xf]
      %v306 = vld [vmem:[%s1 + $0x54] sm:$0xf]
      %v307 = vld [vmem:[%s1 + $0x58] sm:$0xf]
      %v308 = vld [vmem:[%s1 + $0x5c] sm:$0xf]
      %v309 = vld [vmem:[%s1 + $0x60] sm:$0xf]
      %v310 = vld [vmem:[%s1 + $0x64] sm:$0xf]
      %v311 = vld [vmem:[%s1 + $0x68] sm:$0xf]
      %v312 = vld [vmem:[%s1 + $0x6c] sm:$0xf]
      %v313 = vld [vmem:[%s1 + $0x70] sm:$0xf]
      %v314 = vld [vmem:[%s1 + $0x74] sm:$0xf]
      %v315 = vld [vmem:[%s1 + $0x78] sm:$0xf]
      %v316 = vld [vmem:[%s1 + $0x7c] sm:$0xf]
      %v317 = vld [vmem:[%s1 + $0x80] sm:$0xf]
      %v318 = vld [vmem:[%s1 + $0x84] sm:$0xf]
      %v319 = vld [vmem:[%s1 + $0x88] sm:$0xf]
      %v320 = vld [vmem:[%s1 + $0x8c] sm:$0xf]
      %v321 = vld [vmem:[%s1 + $0x90] sm:$0xf]
      %v322 = vld [vmem:[%s1 + $0x94] sm:$0xf]
      %v323 = vld [vmem:[%s1 + $0x98] sm:$0xf]
      %v324 = vld [vmem:[%s1 + $0x9c] sm:$0xf]
      %v325 = vld [vmem:[%s1 + $0xa0] sm:$0xf]
      %v326 = vld [vmem:[%s1 + $0xa4] sm:$0xf]
      %v327 = vld [vmem:[%s1 + $0xa8] sm:$0xf]
      %v328 = vld [vmem:[%s1 + $0xac] sm:$0xf]
      %v329 = vld [vmem:[%s1 + $0xb0] sm:$0xf]
      %v330 = vld [vmem:[%s1 + $0xb4] sm:$0xf]
      %v331 = vld [vmem:[%s1 + $0xb8] sm:$0xf]
      %v332 = vld [vmem:[%s1 + $0xbc] sm:$0xf]
      %v333 = vld [vmem:[%s1 + $0xc0] sm:$0xf]
      %v334 = vld [vmem:[%s1 + $0xc4] sm:$0xf]
      %v335 = vld [vmem:[%s1 + $0xc8] sm:$0xf]
      %v336 = vld [vmem:[%s1 + $0xcc] sm:$0xf]
      %v337 = vld [vmem:[%s1 + $0xd0] sm:$0xf]
      %v338 = vld [vmem:[%s1 + $0xd4] sm:$0xf]
      %v339 = vld [vmem:[%s1 + $0xd8] sm:$0xf]
      %v340 = vld [vmem:[%s1 + $0xdc] sm:$0xf]
      %v341 = vld [vmem:[%s1 + $0xe0] sm:$0xf]
      %v342 = vld [vmem:[%s1 + $0xe4] sm:$0xf]
      %v343 = vld [vmem:[%s1 + $0xe8] sm:$0xf]
      %v344 = vld [vmem:[%s1 + $0xec] sm:$0xf]
      %v345 = vld [vmem:[%s1 + $0xf0] sm:$0xf]
      %v346 = vld [vmem:[%s1 + $0xf4] sm:$0xf]
      %v347 = vld [vmem:[%s1 + $0xf8] sm:$0xf]
      %v348 = vld [vmem:[%s1 + $0xfc] sm:$0xf]
      %v349 = vld [vmem:[%s1 + $0x100] sm:$0xf]
      %v350 = vld [vmem:[%s1 + $0x104] sm:$0xf]
      %v351 = vld [vmem:[%s1 + $0x108] sm:$0xf]
      %v352 = vld [vmem:[%s1 + $0x10c] sm:$0xf]
      %v353 = vld [vmem:[%s1 + $0x110] sm:$0xf]
      %v354 = vld [vmem:[%s1 + $0x114] sm:$0xf]
      %v355 = vld [vmem:[%s1 + $0x118] sm:$0xf]
      %v356 = vld [vmem:[%s1 + $0x11c] sm:$0xf]
      %v453 = vunpack.c.l.b16 %v189
      %v454 = vunpack.c.h.b16 %v189
      %v455 = vunpack.c.l.b16 %v190
      %v456 = vunpack.c.h.b16 %v190
      %v457 = vunpack.c.l.b16 %v191
      %v458 = vunpack.c.l.b16 %v192
      %v459 = vunpack.c.h.b16 %v192
      %v460 = vunpack.c.l.b16 %v193
      %v461 = vunpack.c.h.b16 %v193
      %v462 = vunpack.c.l.b16 %v194
      %v463 = vunpack.c.l.b16 %v195
      %v464 = vunpack.c.h.b16 %v195
      %v465 = vunpack.c.l.b16 %v196
      %v466 = vunpack.c.h.b16 %v196
      %v467 = vunpack.c.l.b16 %v197
      %v468 = vunpack.c.l.b16 %v198
      %v469 = vunpack.c.h.b16 %v198
      %v470 = vunpack.c.l.b16 %v199
      %v471 = vunpack.c.h.b16 %v199
      %v472 = vunpack.c.l.b16 %v200
      %v473 = vunpack.c.l.b16 %v201
      %v474 = vunpack.c.h.b16 %v201
      %v475 = vunpack.c.l.b16 %v202
      %v476 = vunpack.c.h.b16 %v202
      %v477 = vunpack.c.l.b16 %v203
      %v478 = vunpack.c.l.b16 %v204
      %v479 = vunpack.c.h.b16 %v204
      %v480 = vunpack.c.l.b16 %v205
      %v481 = vunpack.c.h.b16 %v205
      %v482 = vunpack.c.l.b16 %v206
      %v483 = vunpack.c.l.b16 %v207
      %v484 = vunpack.c.h.b16 %v207
      %v485 = vunpack.c.l.b16 %v208
      %v486 = vunpack.c.h.b16 %v208
      %v487 = vunpack.c.l.b16 %v209
      %v488 = vunpack.c.l.b16 %v210
      %v489 = vunpack.c.h.b16 %v210
      %v490 = vunpack.c.l.b16 %v211
      %v491 = vunpack.c.h.b16 %v211
      %v492 = vunpack.c.l.b16 %v212
      %v493 = vunpack.c.l.b16 %v213
      %v494 = vunpack.c.h.b16 %v213
      %v495 = vunpack.c.l.b16 %v214
      %v496 = vunpack.c.h.b16 %v214
      %v497 = vunpack.c.l.b16 %v215
      %v498 = vunpack.c.l.b16 %v216
      %v499 = vunpack.c.h.b16 %v216
      %v500 = vunpack.c.l.b16 %v217
      %v501 = vunpack.c.h.b16 %v217
      %v502 = vunpack.c.l.b16 %v218
      %v503 = vunpack.c.l.b16 %v219
      %v504 = vunpack.c.h.b16 %v219
      %v505 = vunpack.c.l.b16 %v220
      %v506 = vunpack.c.h.b16 %v220
      %v507 = vunpack.c.l.b16 %v221
      %v508 = vunpack.c.l.b16 %v222
      %v509 = vunpack.c.h.b16 %v222
      %v510 = vunpack.c.l.b16 %v223
      %v511 = vunpack.c.h.b16 %v223
      %v512 = vunpack.c.l.b16 %v224
      %v513 = vunpack.c.l.b16 %v225
      %v514 = vunpack.c.h.b16 %v225
      %v515 = vunpack.c.l.b16 %v226
      %v516 = vunpack.c.h.b16 %v226
      %v517 = vunpack.c.l.b16 %v227
      %v518 = vunpack.c.l.b16 %v228
      %v519 = vunpack.c.h.b16 %v228
      %v520 = vunpack.c.l.b16 %v229
      %v521 = vunpack.c.h.b16 %v229
      %v522 = vunpack.c.l.b16 %v230
      %v523 = vunpack.c.l.b16 %v231
      %v524 = vunpack.c.h.b16 %v231
      %v525 = vunpack.c.l.b16 %v232
      %v526 = vunpack.c.h.b16 %v232
      %v527 = vunpack.c.l.b16 %v233
      %v528 = vunpack.c.l.b16 %v234
      %v529 = vunpack.c.h.b16 %v234
      %v530 = vunpack.c.l.b16 %v235
      %v531 = vunpack.c.h.b16 %v235
      %v532 = vunpack.c.l.b16 %v236
      %v533 = vunpack.c.l.b16 %v237
      %v534 = vunpack.c.h.b16 %v237
      %v535 = vunpack.c.l.b16 %v238
      %v536 = vunpack.c.h.b16 %v238
      %v537 = vunpack.c.l.b16 %v239
      %v538 = vunpack.c.l.b16 %v240
      %v539 = vunpack.c.h.b16 %v240
      %v540 = vunpack.c.l.b16 %v241
      %v541 = vunpack.c.h.b16 %v241
      %v542 = vunpack.c.l.b16 %v242
      %v543 = vunpack.c.l.b16 %v243
      %v544 = vunpack.c.h.b16 %v243
      %v545 = vunpack.c.l.b16 %v244
      %v546 = vunpack.c.h.b16 %v244
      %v547 = vunpack.c.l.b16 %v245
      %v548 = vunpack.c.l.b16 %v246
      %v549 = vunpack.c.h.b16 %v246
      %v550 = vunpack.c.l.b16 %v247
      %v551 = vunpack.c.h.b16 %v247
      %v552 = vunpack.c.l.b16 %v248
      %v553 = vunpack.c.l.b16 %v249
      %v554 = vunpack.c.h.b16 %v249
      %v555 = vunpack.c.l.b16 %v250
      %v556 = vunpack.c.h.b16 %v250
      %v557 = vunpack.c.l.b16 %v251
      %v558 = vunpack.c.l.b16 %v252
      %v559 = vunpack.c.h.b16 %v252
      %v560 = vunpack.c.l.b16 %v253
      %v561 = vunpack.c.h.b16 %v253
      %v562 = vunpack.c.l.b16 %v254
      %v563 = vunpack.c.l.b16 %v255
      %v564 = vunpack.c.h.b16 %v255
      %v565 = vunpack.c.l.b16 %v256
      %v566 = vunpack.c.h.b16 %v256
      %v567 = vunpack.c.l.b16 %v257
      %v568 = vunpack.c.l.b16 %v258
      %v569 = vunpack.c.h.b16 %v258
      %v570 = vunpack.c.l.b16 %v259
      %v571 = vunpack.c.h.b16 %v259
      %v572 = vunpack.c.l.b16 %v260
      %v573 = vunpack.c.l.b16 %v261
      %v574 = vunpack.c.h.b16 %v261
      %v575 = vunpack.c.l.b16 %v262
      %v576 = vunpack.c.h.b16 %v262
      %v577 = vunpack.c.l.b16 %v263
      %v578 = vunpack.c.l.b16 %v264
      %v579 = vunpack.c.h.b16 %v264
      %v580 = vunpack.c.l.b16 %v265
      %v581 = vunpack.c.h.b16 %v265
      %v582 = vunpack.c.l.b16 %v266
      %v583 = vunpack.c.l.b16 %v267
      %v584 = vunpack.c.h.b16 %v267
      %v585 = vunpack.c.l.b16 %v268
      %v586 = vunpack.c.h.b16 %v268
      %v587 = vunpack.c.l.b16 %v269
      %v588 = vunpack.c.l.b16 %v270
      %v589 = vunpack.c.h.b16 %v270
      %v590 = vunpack.c.l.b16 %v271
      %v591 = vunpack.c.h.b16 %v271
      %v592 = vunpack.c.l.b16 %v272
      %v593 = vunpack.c.l.b16 %v273
      %v594 = vunpack.c.h.b16 %v273
      %v595 = vunpack.c.l.b16 %v274
      %v596 = vunpack.c.h.b16 %v274
      %v597 = vunpack.c.l.b16 %v275
      %v598 = vunpack.c.l.b16 %v276
      %v599 = vunpack.c.h.b16 %v276
      %v600 = vunpack.c.l.b16 %v277
      %v601 = vunpack.c.h.b16 %v277
      %v602 = vunpack.c.l.b16 %v278
      %v603 = vunpack.c.l.b16 %v279
      %v604 = vunpack.c.h.b16 %v279
      %v605 = vunpack.c.l.b16 %v280
      %v606 = vunpack.c.h.b16 %v280
      %v607 = vunpack.c.l.b16 %v281
      %v608 = vunpack.c.l.b16 %v282
      %v609 = vunpack.c.h.b16 %v282
      %v610 = vunpack.c.l.b16 %v283
      %v611 = vunpack.c.h.b16 %v283
      %v612 = vunpack.c.l.b16 %v284
      %v613 = vpack.c.b16 %v458, %v453
      %v614 = vpack.c.b16 %v459, %v454
      %v615 = vpack.c.b16 %v460, %v455
      %v616 = vpack.c.b16 %v461, %v456
      %v617 = vpack.c.b16 %v462, %v457
      %v618 = vpack.c.b16 %v468, %v463
      %v619 = vpack.c.b16 %v469, %v464
      %v620 = vpack.c.b16 %v470, %v465
      %v621 = vpack.c.b16 %v471, %v466
      %v622 = vpack.c.b16 %v472, %v467
      %v623 = vpack.c.b16 %v478, %v473
      %v624 = vpack.c.b16 %v479, %v474
      %v625 = vpack.c.b16 %v480, %v475
      %v626 = vpack.c.b16 %v481, %v476
      %v627 = vpack.c.b16 %v482, %v477
      %v628 = vpack.c.b16 %v488, %v483
      %v629 = vpack.c.b16 %v489, %v484
      %v630 = vpack.c.b16 %v490, %v485
      %v631 = vpack.c.b16 %v491, %v486
      %v632 = vpack.c.b16 %v492, %v487
      %v633 = vpack.c.b16 %v498, %v493
      %v634 = vpack.c.b16 %v499, %v494
      %v635 = vpack.c.b16 %v500, %v495
      %v636 = vpack.c.b16 %v501, %v496
      %v637 = vpack.c.b16 %v502, %v497
      %v638 = vpack.c.b16 %v508, %v503
      %v639 = vpack.c.b16 %v509, %v504
      %v640 = vpack.c.b16 %v510, %v505
      %v641 = vpack.c.b16 %v511, %v506
      %v642 = vpack.c.b16 %v512, %v507
      %v643 = vpack.c.b16 %v518, %v513
      %v644 = vpack.c.b16 %v519, %v514
      %v645 = vpack.c.b16 %v520, %v515
      %v646 = vpack.c.b16 %v521, %v516
      %v647 = vpack.c.b16 %v522, %v517
      %v648 = vpack.c.b16 %v528, %v523
      %v649 = vpack.c.b16 %v529, %v524
      %v650 = vpack.c.b16 %v530, %v525
      %v651 = vpack.c.b16 %v531, %v526
      %v652 = vpack.c.b16 %v532, %v527
      %v653 = vpack.c.b16 %v538, %v533
      %v654 = vpack.c.b16 %v539, %v534
      %v655 = vpack.c.b16 %v540, %v535
      %v656 = vpack.c.b16 %v541, %v536
      %v657 = vpack.c.b16 %v542, %v537
      %v658 = vpack.c.b16 %v548, %v543
      %v659 = vpack.c.b16 %v549, %v544
      %v660 = vpack.c.b16 %v550, %v545
      %v661 = vpack.c.b16 %v551, %v546
      %v662 = vpack.c.b16 %v552, %v547
      %v663 = vpack.c.b16 %v558, %v553
      %v664 = vpack.c.b16 %v559, %v554
      %v665 = vpack.c.b16 %v560, %v555
      %v666 = vpack.c.b16 %v561, %v556
      %v667 = vpack.c.b16 %v562, %v557
      %v668 = vpack.c.b16 %v568, %v563
      %v669 = vpack.c.b16 %v569, %v564
      %v670 = vpack.c.b16 %v570, %v565
      %v671 = vpack.c.b16 %v571, %v566
      %v672 = vpack.c.b16 %v572, %v567
      %v673 = vpack.c.b16 %v578, %v573
      %v674 = vpack.c.b16 %v579, %v574
      %v675 = vpack.c.b16 %v580, %v575
      %v676 = vpack.c.b16 %v581, %v576
      %v677 = vpack.c.b16 %v582, %v577
      %v678 = vpack.c.b16 %v588, %v583
      %v679 = vpack.c.b16 %v589, %v584
      %v680 = vpack.c.b16 %v590, %v585
      %v681 = vpack.c.b16 %v591, %v586
      %v682 = vpack.c.b16 %v592, %v587
      %v683 = vpack.c.b16 %v598, %v593
      %v684 = vpack.c.b16 %v599, %v594
      %v685 = vpack.c.b16 %v600, %v595
      %v686 = vpack.c.b16 %v601, %v596
      %v687 = vpack.c.b16 %v602, %v597
      %v688 = vpack.c.b16 %v608, %v603
      %v689 = vpack.c.b16 %v609, %v604
      %v690 = vpack.c.b16 %v610, %v605
      %v691 = vpack.c.b16 %v611, %v606
      %v692 = vpack.c.b16 %v612, %v607
      %v829 = vunpack.c.l.b16 %v285
      %v830 = vunpack.c.l.b16 %v286
      %v831 = vunpack.c.l.b16 %v287
      %v832 = vunpack.c.l.b16 %v288
      %v833 = vunpack.c.l.b16 %v289
      %v834 = vunpack.c.l.b16 %v290
      %v835 = vunpack.c.l.b16 %v291
      %v836 = vunpack.c.l.b16 %v292
      %v837 = vunpack.c.l.b16 %v293
      %v838 = vunpack.c.l.b16 %v294
      %v839 = vunpack.c.l.b16 %v295
      %v840 = vunpack.c.l.b16 %v296
      %v841 = vunpack.c.l.b16 %v297
      %v842 = vunpack.c.l.b16 %v298
      %v843 = vunpack.c.l.b16 %v299
      %v844 = vunpack.c.l.b16 %v300
      %v845 = vunpack.c.l.b16 %v301
      %v846 = vunpack.c.l.b16 %v302
      %v847 = vunpack.c.l.b16 %v303
      %v848 = vunpack.c.l.b16 %v304
      %v849 = vunpack.c.l.b16 %v305
      %v850 = vunpack.c.l.b16 %v306
      %v851 = vunpack.c.l.b16 %v307
      %v852 = vunpack.c.l.b16 %v308
      %v853 = vunpack.c.l.b16 %v309
      %v854 = vunpack.c.l.b16 %v310
      %v855 = vunpack.c.l.b16 %v311
      %v856 = vunpack.c.l.b16 %v312
      %v857 = vunpack.c.l.b16 %v313
      %v858 = vunpack.c.l.b16 %v314
      %v859 = vunpack.c.l.b16 %v315
      %v860 = vunpack.c.l.b16 %v316
      %v861 = vunpack.c.l.b16 %v317
      %v862 = vunpack.c.l.b16 %v318
      %v863 = vunpack.c.l.b16 %v319
      %v864 = vunpack.c.l.b16 %v320
      %v865 = vunpack.c.l.b16 %v321
      %v866 = vunpack.c.l.b16 %v322
      %v867 = vunpack.c.l.b16 %v323
      %v868 = vunpack.c.l.b16 %v324
      %v869 = vunpack.c.l.b16 %v325
      %v870 = vunpack.c.l.b16 %v326
      %v871 = vunpack.c.l.b16 %v327
      %v872 = vunpack.c.l.b16 %v328
      %v873 = vunpack.c.l.b16 %v329
      %v874 = vunpack.c.l.b16 %v330
      %v875 = vunpack.c.l.b16 %v331
      %v876 = vunpack.c.l.b16 %v332
      %v877 = vunpack.c.l.b16 %v333
      %v878 = vunpack.c.l.b16 %v334
      %v879 = vunpack.c.l.b16 %v335
      %v880 = vunpack.c.l.b16 %v336
      %v881 = vunpack.c.l.b16 %v337
      %v882 = vunpack.c.l.b16 %v338
      %v883 = vunpack.c.l.b16 %v339
      %v884 = vunpack.c.l.b16 %v340
      %v885 = vunpack.c.l.b16 %v341
      %v886 = vunpack.c.l.b16 %v342
      %v887 = vunpack.c.l.b16 %v343
      %v888 = vunpack.c.l.b16 %v344
      %v889 = vunpack.c.l.b16 %v345
      %v890 = vunpack.c.l.b16 %v346
      %v891 = vunpack.c.l.b16 %v347
      %v892 = vunpack.c.l.b16 %v348
      %v893 = vunpack.c.l.b16 %v349
      %v894 = vunpack.c.l.b16 %v350
      %v895 = vunpack.c.l.b16 %v351
      %v896 = vunpack.c.l.b16 %v352
      %v897 = vunpack.c.l.b16 %v353
      %v898 = vunpack.c.l.b16 %v354
      %v899 = vunpack.c.l.b16 %v355
      %v900 = vunpack.c.l.b16 %v356
      %v901 = vpack.c.b16 %v830, %v829
      %v902 = vpack.c.b16 %v832, %v831
      %v903 = vpack.c.b16 %v834, %v833
      %v904 = vpack.c.b16 %v836, %v835
      %v905 = vpack.c.b16 %v838, %v837
      %v906 = vpack.c.b16 %v840, %v839
      %v907 = vpack.c.b16 %v842, %v841
      %v908 = vpack.c.b16 %v844, %v843
      %v909 = vpack.c.b16 %v846, %v845
      %v910 = vpack.c.b16 %v848, %v847
      %v911 = vpack.c.b16 %v850, %v849
      %v912 = vpack.c.b16 %v852, %v851
      %v913 = vpack.c.b16 %v854, %v853
      %v914 = vpack.c.b16 %v856, %v855
      %v915 = vpack.c.b16 %v858, %v857
      %v916 = vpack.c.b16 %v860, %v859
      %v917 = vpack.c.b16 %v862, %v861
      %v918 = vpack.c.b16 %v864, %v863
      %v919 = vpack.c.b16 %v866, %v865
      %v920 = vpack.c.b16 %v868, %v867
      %v921 = vpack.c.b16 %v870, %v869
      %v922 = vpack.c.b16 %v872, %v871
      %v923 = vpack.c.b16 %v874, %v873
      %v924 = vpack.c.b16 %v876, %v875
      %v925 = vpack.c.b16 %v878, %v877
      %v926 = vpack.c.b16 %v880, %v879
      %v927 = vpack.c.b16 %v882, %v881
      %v928 = vpack.c.b16 %v884, %v883
      %v929 = vpack.c.b16 %v886, %v885
      %v930 = vpack.c.b16 %v888, %v887
      %v931 = vpack.c.b16 %v890, %v889
      %v932 = vpack.c.b16 %v892, %v891
      %v933 = vpack.c.b16 %v894, %v893
      %v934 = vpack.c.b16 %v896, %v895
      %v935 = vpack.c.b16 %v898, %v897
      %v936 = vpack.c.b16 %v900, %v899
      %vm973 = vcmask 523264
      %v975 = vsel %vm973, %v617, 0
      %v978 = vsel %vm973, %v622, 0
      %v981 = vsel %vm973, %v627, 0
      %v984 = vsel %vm973, %v632, 0
      %v987 = vsel %vm973, %v637, 0
      %v990 = vsel %vm973, %v642, 0
      %v993 = vsel %vm973, %v647, 0
      %v996 = vsel %vm973, %v652, 0
      %v999 = vsel %vm973, %v657, 0
      %v1002 = vsel %vm973, %v662, 0
      %v1005 = vsel %vm973, %v667, 0
      %v1008 = vsel %vm973, %v672, 0
      %v1011 = vsel %vm973, %v677, 0
      %v1014 = vsel %vm973, %v682, 0
      %v1017 = vsel %vm973, %v687, 0
      %v1020 = vsel %vm973, %v692, 0
      %1022 = vmatprep.subr.bf16.mxu0 0
      %1023 = vmatpush1.bf16.msra.mxu0 %v901
      %1024 = vmatprep.subr.bf16.mxu0 0
      %1025 = vmatpush1.bf16.msra.mxu0 %v902
      %1026 = vmatprep.subr.bf16.mxu0 0
      %1027 = vmatpush1.bf16.msra.mxu0 %v903
      %1028 = vmatprep.subr.bf16.mxu0 0
      %1029 = vmatpush1.bf16.msra.mxu0 %v904
      %1030 = vmatprep.subr.bf16.mxu0 0
      %1031 = vmatpush1.bf16.msra.mxu0 %v905
      %1032 = vmatprep.subr.bf16.mxu0 0
      %1033 = vmatpush1.bf16.msra.mxu0 %v906
      %1034 = vmatprep.subr.bf16.mxu0 0
      %1035 = vmatpush1.bf16.msra.mxu0 %v907
      %1036 = vmatprep.subr.bf16.mxu0 0
      %1037 = vmatpush1.bf16.msra.mxu0 %v908
      %1038 = vmatprep.subr.bf16.mxu0 0
      %1039 = vmatpush1.bf16.msra.mxu0 %v909
      %1040 = vmatprep.subr.bf16.mxu0 0
      %1041 = vmatpush1.bf16.msra.mxu0 %v910
      %1042 = vmatprep.subr.bf16.mxu0 0
      %1043 = vmatpush1.bf16.msra.mxu0 %v911
      %1044 = vmatprep.subr.bf16.mxu0 0
      %1045 = vmatpush1.bf16.msra.mxu0 %v912
      %1046 = vmatprep.subr.bf16.mxu0 0
      %1047 = vmatpush1.bf16.msra.mxu0 %v913
      %1048 = vmatprep.subr.bf16.mxu0 0
      %1049 = vmatpush1.bf16.msra.mxu0 %v914
      %1050 = vmatprep.subr.bf16.mxu0 0
      %1051 = vmatpush1.bf16.msra.mxu0 %v915
      %1052 = vmatprep.subr.bf16.mxu0 0
      %1053 = vmatpush1.bf16.msra.mxu0 %v916
      %1054 = vmatprep.mubr.bf16.mxu0 %v614
      %1055 = vmatmul.mubr.bf16.gmra.mrb[0].mxu0 %v613
      %v1056 = vpop.f32.mrb[0].mxu0
      %v1057 = vadd.f32 0.0, %v1056
      %v1058 = vpop.f32.mrb[0].mxu0
      %v1059 = vpop.f32.mrb[0].mxu0
      %v1060 = vadd.f32 0.0, %v1059
      %v1061 = vpop.f32.mrb[0].mxu0
      %1062 = vmatprep.mubr.bf16.mxu0 %v619
      %1063 = vmatmul.mubr.bf16.gmra.mrb[0].mxu0 %v618
      %v1064 = vpop.f32.mrb[0].mxu0
      %v1065 = vadd.f32 0.0, %v1064
      %v1066 = vpop.f32.mrb[0].mxu0
      %v1067 = vpop.f32.mrb[0].mxu0
      %v1068 = vadd.f32 0.0, %v1067
      %v1069 = vpop.f32.mrb[0].mxu0
      %1070 = vmatprep.mubr.bf16.mxu0 %v624
      %1071 = vmatmul.mubr.bf16.gmra.mrb[0].mxu0 %v623
      %v1072 = vpop.f32.mrb[0].mxu0
      %v1073 = vadd.f32 0.0, %v1072
      %v1074 = vpop.f32.mrb[0].mxu0
      %v1075 = vpop.f32.mrb[0].mxu0
      %v1076 = vadd.f32 0.0, %v1075
      %v1077 = vpop.f32.mrb[0].mxu0
      %1078 = vmatprep.mubr.bf16.mxu0 %v629
      %1079 = vmatmul.mubr.bf16.gmra.mrb[0].mxu0 %v628
      %v1080 = vpop.f32.mrb[0].mxu0
      %v1081 = vadd.f32 0.0, %v1080
      %v1082 = vpop.f32.mrb[0].mxu0
      %v1083 = vpop.f32.mrb[0].mxu0
      %v1084 = vadd.f32 0.0, %v1083
      %v1085 = vpop.f32.mrb[0].mxu0
      %1086 = vmatprep.mubr.bf16.mxu0 %v634
      %1087 = vmatmul.mubr.bf16.gmra.mrb[0].mxu0 %v633
      %v1088 = vpop.f32.mrb[0].mxu0
      %v1089 = vadd.f32 0.0, %v1088
      %v1090 = vpop.f32.mrb[0].mxu0
      %v1091 = vpop.f32.mrb[0].mxu0
      %v1092 = vadd.f32 0.0, %v1091
      %v1093 = vpop.f32.mrb[0].mxu0
      %1094 = vmatprep.mubr.bf16.mxu0 %v639
      %1095 = vmatmul.mubr.bf16.gmra.mrb[0].mxu0 %v638
      %v1096 = vpop.f32.mrb[0].mxu0
      %v1097 = vadd.f32 0.0, %v1096
      %v1098 = vpop.f32.mrb[0].mxu0
      %v1099 = vpop.f32.mrb[0].mxu0
      %v1100 = vadd.f32 0.0, %v1099
      %v1101 = vpop.f32.mrb[0].mxu0
      %1102 = vmatprep.mubr.bf16.mxu0 %v644
      %1103 = vmatmul.mubr.bf16.gmra.mrb[0].mxu0 %v643
      %v1104 = vpop.f32.mrb[0].mxu0
      %v1105 = vadd.f32 0.0, %v1104
      %v1106 = vpop.f32.mrb[0].mxu0
      %v1107 = vpop.f32.mrb[0].mxu0
      %v1108 = vadd.f32 0.0, %v1107
      %v1109 = vpop.f32.mrb[0].mxu0
      %1110 = vmatprep.mubr.bf16.mxu0 %v649
      %1111 = vmatmul.mubr.bf16.gmra.mrb[0].mxu0 %v648
      %v1112 = vpop.f32.mrb[0].mxu0
      %v1113 = vadd.f32 0.0, %v1112
      %v1114 = vpop.f32.mrb[0].mxu0
      %v1115 = vpop.f32.mrb[0].mxu0
      %v1116 = vadd.f32 0.0, %v1115
      %v1117 = vpop.f32.mrb[0].mxu0
      %1118 = vmatprep.mubr.bf16.mxu0 %v654
      %1119 = vmatmul.mubr.bf16.gmra.mrb[0].mxu0 %v653
      %v1120 = vpop.f32.mrb[0].mxu0
      %v1121 = vadd.f32 0.0, %v1120
      %v1122 = vpop.f32.mrb[0].mxu0
      %v1123 = vpop.f32.mrb[0].mxu0
      %v1124 = vadd.f32 0.0, %v1123
      %v1125 = vpop.f32.mrb[0].mxu0
      %1126 = vmatprep.mubr.bf16.mxu0 %v659
      %1127 = vmatmul.mubr.bf16.gmra.mrb[0].mxu0 %v658
      %v1128 = vpop.f32.mrb[0].mxu0
      %v1129 = vadd.f32 0.0, %v1128
      %v1130 = vpop.f32.mrb[0].mxu0
      %v1131 = vpop.f32.mrb[0].mxu0
      %v1132 = vadd.f32 0.0, %v1131
      %v1133 = vpop.f32.mrb[0].mxu0
      %1134 = vmatprep.mubr.bf16.mxu0 %v664
      %1135 = vmatmul.mubr.bf16.gmra.mrb[0].mxu0 %v663
      %v1136 = vpop.f32.mrb[0].mxu0
      %v1137 = vadd.f32 0.0, %v1136
      %v1138 = vpop.f32.mrb[0].mxu0
      %v1139 = vpop.f32.mrb[0].mxu0
      %v1140 = vadd.f32 0.0, %v1139
      %v1141 = vpop.f32.mrb[0].mxu0
      %1142 = vmatprep.mubr.bf16.mxu0 %v669
      %1143 = vmatmul.mubr.bf16.gmra.mrb[0].mxu0 %v668
      %v1144 = vpop.f32.mrb[0].mxu0
      %v1145 = vadd.f32 0.0, %v1144
      %v1146 = vpop.f32.mrb[0].mxu0
      %v1147 = vpop.f32.mrb[0].mxu0
      %v1148 = vadd.f32 0.0, %v1147
      %v1149 = vpop.f32.mrb[0].mxu0
      %1150 = vmatprep.mubr.bf16.mxu0 %v674
      %1151 = vmatmul.mubr.bf16.gmra.mrb[0].mxu0 %v673
      %v1152 = vpop.f32.mrb[0].mxu0
      %v1153 = vadd.f32 0.0, %v1152
      %v1154 = vpop.f32.mrb[0].mxu0
      %v1155 = vpop.f32.mrb[0].mxu0
      %v1156 = vadd.f32 0.0, %v1155
      %v1157 = vpop.f32.mrb[0].mxu0
      %1158 = vmatprep.mubr.bf16.mxu0 %v679
      %1159 = vmatmul.mubr.bf16.gmra.mrb[0].mxu0 %v678
      %v1160 = vpop.f32.mrb[0].mxu0
      %v1161 = vadd.f32 0.0, %v1160
      %v1162 = vpop.f32.mrb[0].mxu0
      %v1163 = vpop.f32.mrb[0].mxu0
      %v1164 = vadd.f32 0.0, %v1163
      %v1165 = vpop.f32.mrb[0].mxu0
      %1166 = vmatprep.mubr.bf16.mxu0 %v684
      %1167 = vmatmul.mubr.bf16.gmra.mrb[0].mxu0 %v683
      %v1168 = vpop.f32.mrb[0].mxu0
      %v1169 = vadd.f32 0.0, %v1168
      %v1170 = vpop.f32.mrb[0].mxu0
      %v1171 = vpop.f32.mrb[0].mxu0
      %v1172 = vadd.f32 0.0, %v1171
      %v1173 = vpop.f32.mrb[0].mxu0
      %1174 = vmatprep.mubr.bf16.mxu0 %v689
      %1175 = vmatmul.mubr.bf16.gmra.mrb[0].mxu0 %v688
      %v1176 = vpop.f32.mrb[0].mxu0
      %v1177 = vadd.f32 0.0, %v1176
      %v1178 = vpop.f32.mrb[0].mxu0
      %v1179 = vpop.f32.mrb[0].mxu0
      %v1180 = vadd.f32 0.0, %v1179
      %v1181 = vpop.f32.mrb[0].mxu0
      %1182 = vdwg.mxu0
      %1183 = vmatprep.subr.bf16.mxu0 0
      %1184 = vmatpush1.bf16.msra.mxu0 %v917
      %1185 = vmatprep.subr.bf16.mxu0 0
      %1186 = vmatpush1.bf16.msra.mxu0 %v918
      %1187 = vmatprep.subr.bf16.mxu0 0
      %1188 = vmatpush1.bf16.msra.mxu0 %v919
      %1189 = vmatprep.subr.bf16.mxu0 0
      %1190 = vmatpush1.bf16.msra.mxu0 %v920
      %1191 = vmatprep.subr.bf16.mxu0 0
      %1192 = vmatpush1.bf16.msra.mxu0 %v921
      %1193 = vmatprep.subr.bf16.mxu0 0
      %1194 = vmatpush1.bf16.msra.mxu0 %v922
      %1195 = vmatprep.subr.bf16.mxu0 0
      %1196 = vmatpush1.bf16.msra.mxu0 %v923
      %1197 = vmatprep.subr.bf16.mxu0 0
      %1198 = vmatpush1.bf16.msra.mxu0 %v924
      %1199 = vmatprep.subr.bf16.mxu0 0
      %1200 = vmatpush1.bf16.msra.mxu0 %v925
      %1201 = vmatprep.subr.bf16.mxu0 0
      %1202 = vmatpush1.bf16.msra.mxu0 %v926
      %1203 = vmatprep.subr.bf16.mxu0 0
      %1204 = vmatpush1.bf16.msra.mxu0 %v927
      %1205 = vmatprep.subr.bf16.mxu0 0
      %1206 = vmatpush1.bf16.msra.mxu0 %v928
      %1207 = vmatprep.subr.bf16.mxu0 0
      %1208 = vmatpush1.bf16.msra.mxu0 %v929
      %1209 = vmatprep.subr.bf16.mxu0 0
      %1210 = vmatpush1.bf16.msra.mxu0 %v930
      %1211 = vmatprep.subr.bf16.mxu0 0
      %1212 = vmatpush1.bf16.msra.mxu0 %v931
      %1213 = vmatprep.subr.bf16.mxu0 0
      %1214 = vmatpush1.bf16.msra.mxu0 %v932
      %1215 = vmatprep.mubr.bf16.mxu0 %v616
      %1216 = vmatmul.mubr.bf16.gmra.mrb[0].mxu0 %v615
      %v1217 = vpop.f32.mrb[0].mxu0
      %v1218 = vadd.f32 %v1057, %v1217
      %v1219 = vpop.f32.mrb[0].mxu0
      %v1220 = vpop.f32.mrb[0].mxu0
      %v1221 = vadd.f32 %v1060, %v1220
      %v1222 = vpop.f32.mrb[0].mxu0
      %1223 = vmatprep.mubr.bf16.mxu0 %v621
      %1224 = vmatmul.mubr.bf16.gmra.mrb[0].mxu0 %v620
      %v1225 = vpop.f32.mrb[0].mxu0
      %v1226 = vadd.f32 %v1065, %v1225
      %v1227 = vpop.f32.mrb[0].mxu0
      %v1228 = vpop.f32.mrb[0].mxu0
      %v1229 = vadd.f32 %v1068, %v1228
      %v1230 = vpop.f32.mrb[0].mxu0
      %1231 = vmatprep.mubr.bf16.mxu0 %v626
      %1232 = vmatmul.mubr.bf16.gmra.mrb[0].mxu0 %v625
      %v1233 = vpop.f32.mrb[0].mxu0
      %v1234 = vadd.f32 %v1073, %v1233
      %v1235 = vpop.f32.mrb[0].mxu0
      %v1236 = vpop.f32.mrb[0].mxu0
      %v1237 = vadd.f32 %v1076, %v1236
      %v1238 = vpop.f32.mrb[0].mxu0
      %1239 = vmatprep.mubr.bf16.mxu0 %v631
      %1240 = vmatmul.mubr.bf16.gmra.mrb[0].mxu0 %v630
      %v1241 = vpop.f32.mrb[0].mxu0
      %v1242 = vadd.f32 %v1081, %v1241
      %v1243 = vpop.f32.mrb[0].mxu0
      %v1244 = vpop.f32.mrb[0].mxu0
      %v1245 = vadd.f32 %v1084, %v1244
      %v1246 = vpop.f32.mrb[0].mxu0
      %1247 = vmatprep.mubr.bf16.mxu0 %v636
      %1248 = vmatmul.mubr.bf16.gmra.mrb[0].mxu0 %v635
      %v1249 = vpop.f32.mrb[0].mxu0
      %v1250 = vadd.f32 %v1089, %v1249
      %v1251 = vpop.f32.mrb[0].mxu0
      %v1252 = vpop.f32.mrb[0].mxu0
      %v1253 = vadd.f32 %v1092, %v1252
      %v1254 = vpop.f32.mrb[0].mxu0
      %1255 = vmatprep.mubr.bf16.mxu0 %v641
      %1256 = vmatmul.mubr.bf16.gmra.mrb[0].mxu0 %v640
      %v1257 = vpop.f32.mrb[0].mxu0
      %v1258 = vadd.f32 %v1097, %v1257
      %v1259 = vpop.f32.mrb[0].mxu0
      %v1260 = vpop.f32.mrb[0].mxu0
      %v1261 = vadd.f32 %v1100, %v1260
      %v1262 = vpop.f32.mrb[0].mxu0
      %1263 = vmatprep.mubr.bf16.mxu0 %v646
      %1264 = vmatmul.mubr.bf16.gmra.mrb[0].mxu0 %v645
      %v1265 = vpop.f32.mrb[0].mxu0
      %v1266 = vadd.f32 %v1105, %v1265
      %v1267 = vpop.f32.mrb[0].mxu0
      %v1268 = vpop.f32.mrb[0].mxu0
      %v1269 = vadd.f32 %v1108, %v1268
      %v1270 = vpop.f32.mrb[0].mxu0
      %1271 = vmatprep.mubr.bf16.mxu0 %v651
      %1272 = vmatmul.mubr.bf16.gmra.mrb[0].mxu0 %v650
      %v1273 = vpop.f32.mrb[0].mxu0
      %v1274 = vadd.f32 %v1113, %v1273
      %v1275 = vpop.f32.mrb[0].mxu0
      %v1276 = vpop.f32.mrb[0].mxu0
      %v1277 = vadd.f32 %v1116, %v1276
      %v1278 = vpop.f32.mrb[0].mxu0
      %1279 = vmatprep.mubr.bf16.mxu0 %v656
      %1280 = vmatmul.mubr.bf16.gmra.mrb[0].mxu0 %v655
      %v1281 = vpop.f32.mrb[0].mxu0
      %v1282 = vadd.f32 %v1121, %v1281
      %v1283 = vpop.f32.mrb[0].mxu0
      %v1284 = vpop.f32.mrb[0].mxu0
      %v1285 = vadd.f32 %v1124, %v1284
      %v1286 = vpop.f32.mrb[0].mxu0
      %1287 = vmatprep.mubr.bf16.mxu0 %v661
      %1288 = vmatmul.mubr.bf16.gmra.mrb[0].mxu0 %v660
      %v1289 = vpop.f32.mrb[0].mxu0
      %v1290 = vadd.f32 %v1129, %v1289
      %v1291 = vpop.f32.mrb[0].mxu0
      %v1292 = vpop.f32.mrb[0].mxu0
      %v1293 = vadd.f32 %v1132, %v1292
      %v1294 = vpop.f32.mrb[0].mxu0
      %1295 = vmatprep.mubr.bf16.mxu0 %v666
      %1296 = vmatmul.mubr.bf16.gmra.mrb[0].mxu0 %v665
      %v1297 = vpop.f32.mrb[0].mxu0
      %v1298 = vadd.f32 %v1137, %v1297
      %v1299 = vpop.f32.mrb[0].mxu0
      %v1300 = vpop.f32.mrb[0].mxu0
      %v1301 = vadd.f32 %v1140, %v1300
      %v1302 = vpop.f32.mrb[0].mxu0
      %1303 = vmatprep.mubr.bf16.mxu0 %v671
      %1304 = vmatmul.mubr.bf16.gmra.mrb[0].mxu0 %v670
      %v1305 = vpop.f32.mrb[0].mxu0
      %v1306 = vadd.f32 %v1145, %v1305
      %v1307 = vpop.f32.mrb[0].mxu0
      %v1308 = vpop.f32.mrb[0].mxu0
      %v1309 = vadd.f32 %v1148, %v1308
      %v1310 = vpop.f32.mrb[0].mxu0
      %1311 = vmatprep.mubr.bf16.mxu0 %v676
      %1312 = vmatmul.mubr.bf16.gmra.mrb[0].mxu0 %v675
      %v1313 = vpop.f32.mrb[0].mxu0
      %v1314 = vadd.f32 %v1153, %v1313
      %v1315 = vpop.f32.mrb[0].mxu0
      %v1316 = vpop.f32.mrb[0].mxu0
      %v1317 = vadd.f32 %v1156, %v1316
      %v1318 = vpop.f32.mrb[0].mxu0
      %1319 = vmatprep.mubr.bf16.mxu0 %v681
      %1320 = vmatmul.mubr.bf16.gmra.mrb[0].mxu0 %v680
      %v1321 = vpop.f32.mrb[0].mxu0
      %v1322 = vadd.f32 %v1161, %v1321
      %v1323 = vpop.f32.mrb[0].mxu0
      %v1324 = vpop.f32.mrb[0].mxu0
      %v1325 = vadd.f32 %v1164, %v1324
      %v1326 = vpop.f32.mrb[0].mxu0
      %1327 = vmatprep.mubr.bf16.mxu0 %v686
      %1328 = vmatmul.mubr.bf16.gmra.mrb[0].mxu0 %v685
      %v1329 = vpop.f32.mrb[0].mxu0
      %v1330 = vadd.f32 %v1169, %v1329
      %v1331 = vpop.f32.mrb[0].mxu0
      %v1332 = vpop.f32.mrb[0].mxu0
      %v1333 = vadd.f32 %v1172, %v1332
      %v1334 = vpop.f32.mrb[0].mxu0
      %1335 = vmatprep.mubr.bf16.mxu0 %v691
      %1336 = vmatmul.mubr.bf16.gmra.mrb[0].mxu0 %v690
      %v1337 = vpop.f32.mrb[0].mxu0
      %v1338 = vadd.f32 %v1177, %v1337
      %v1339 = vpop.f32.mrb[0].mxu0
      %v1340 = vpop.f32.mrb[0].mxu0
      %v1341 = vadd.f32 %v1180, %v1340
      %v1342 = vpop.f32.mrb[0].mxu0
      %1343 = vdwg.mxu0
      %1344 = vmatprep.subr.bf16.mxu0 0
      %1345 = vmatpush1.bf16.msra.mxu0 %v933
      %1346 = vmatprep.subr.bf16.mxu0 0
      %1347 = vmatpush1.bf16.msra.mxu0 %v934
      %1348 = vmatprep.subr.bf16.mxu0 0
      %1349 = vmatpush1.bf16.msra.mxu0 %v935
      %1350 = vmatprep.subr.bf16.mxu0 0
      %1351 = vmatpush1.bf16.msra.mxu0 %v936
      %1352 = vmatprep.subr.bf16.mxu0 0
      %1353 = vmatpush1.bf16.msra.mxu0 0
      %1354 = vmatprep.subr.bf16.mxu0 0
      %1355 = vmatpush1.bf16.msra.mxu0 0
      %1356 = vmatprep.subr.bf16.mxu0 0
      %1357 = vmatpush1.bf16.msra.mxu0 0
      %1358 = vmatprep.subr.bf16.mxu0 0
      %1359 = vmatpush1.bf16.msra.mxu0 0
      %1360 = vmatprep.subr.bf16.mxu0 0
      %1361 = vmatpush1.bf16.msra.mxu0 0
      %1362 = vmatprep.subr.bf16.mxu0 0
      %1363 = vmatpush1.bf16.msra.mxu0 0
      %1364 = vmatprep.subr.bf16.mxu0 0
      %1365 = vmatpush1.bf16.msra.mxu0 0
      %1366 = vmatprep.subr.bf16.mxu0 0
      %1367 = vmatpush1.bf16.msra.mxu0 0
      %1368 = vmatprep.subr.bf16.mxu0 0
      %1369 = vmatpush1.bf16.msra.mxu0 0
      %1370 = vmatprep.subr.bf16.mxu0 0
      %1371 = vmatpush1.bf16.msra.mxu0 0
      %1372 = vmatprep.subr.bf16.mxu0 0
      %1373 = vmatpush1.bf16.msra.mxu0 0
      %1374 = vmatprep.subr.bf16.mxu0 0
      %1375 = vmatpush1.bf16.msra.mxu0 0
      %1376 = vmatprep.mubr.bf16.mxu0 0
      %1377 = vmatmul.mubr.bf16.gmra.mrb[0].mxu0 %v975
      %v1378 = vpop.f32.mrb[0].mxu0
      %v1379 = vadd.f32 %v1218, %v1378
      %v1380 = vpop.f32.mrb[0].mxu0
      %v1381 = vpop.f32.mrb[0].mxu0
      %v1382 = vadd.f32 %v1221, %v1381
      %v1383 = vpop.f32.mrb[0].mxu0
      %1384 = vmatprep.mubr.bf16.mxu0 0
      %1385 = vmatmul.mubr.bf16.gmra.mrb[0].mxu0 %v978
      %v1386 = vpop.f32.mrb[0].mxu0
      %v1387 = vadd.f32 %v1226, %v1386
      %v1388 = vpop.f32.mrb[0].mxu0
      %v1389 = vpop.f32.mrb[0].mxu0
      %v1390 = vadd.f32 %v1229, %v1389
      %v1391 = vpop.f32.mrb[0].mxu0
      %1392 = vmatprep.mubr.bf16.mxu0 0
      %1393 = vmatmul.mubr.bf16.gmra.mrb[0].mxu0 %v981
      %v1394 = vpop.f32.mrb[0].mxu0
      %v1395 = vadd.f32 %v1234, %v1394
      %v1396 = vpop.f32.mrb[0].mxu0
      %v1397 = vpop.f32.mrb[0].mxu0
      %v1398 = vadd.f32 %v1237, %v1397
      %v1399 = vpop.f32.mrb[0].mxu0
      %1400 = vmatprep.mubr.bf16.mxu0 0
      %1401 = vmatmul.mubr.bf16.gmra.mrb[0].mxu0 %v984
      %v1402 = vpop.f32.mrb[0].mxu0
      %v1403 = vadd.f32 %v1242, %v1402
      %v1404 = vpop.f32.mrb[0].mxu0
      %v1405 = vpop.f32.mrb[0].mxu0
      %v1406 = vadd.f32 %v1245, %v1405
      %v1407 = vpop.f32.mrb[0].mxu0
      %1408 = vmatprep.mubr.bf16.mxu0 0
      %1409 = vmatmul.mubr.bf16.gmra.mrb[0].mxu0 %v987
      %v1410 = vpop.f32.mrb[0].mxu0
      %v1411 = vadd.f32 %v1250, %v1410
      %v1412 = vpop.f32.mrb[0].mxu0
      %v1413 = vpop.f32.mrb[0].mxu0
      %v1414 = vadd.f32 %v1253, %v1413
      %v1415 = vpop.f32.mrb[0].mxu0
      %1416 = vmatprep.mubr.bf16.mxu0 0
      %1417 = vmatmul.mubr.bf16.gmra.mrb[0].mxu0 %v990
      %v1418 = vpop.f32.mrb[0].mxu0
      %v1419 = vadd.f32 %v1258, %v1418
      %v1420 = vpop.f32.mrb[0].mxu0
      %v1421 = vpop.f32.mrb[0].mxu0
      %v1422 = vadd.f32 %v1261, %v1421
      %v1423 = vpop.f32.mrb[0].mxu0
      %1424 = vmatprep.mubr.bf16.mxu0 0
      %1425 = vmatmul.mubr.bf16.gmra.mrb[0].mxu0 %v993
      %v1426 = vpop.f32.mrb[0].mxu0
      %v1427 = vadd.f32 %v1266, %v1426
      %v1428 = vpop.f32.mrb[0].mxu0
      %v1429 = vpop.f32.mrb[0].mxu0
      %v1430 = vadd.f32 %v1269, %v1429
      %v1431 = vpop.f32.mrb[0].mxu0
      %1432 = vmatprep.mubr.bf16.mxu0 0
      %1433 = vmatmul.mubr.bf16.gmra.mrb[0].mxu0 %v996
      %v1434 = vpop.f32.mrb[0].mxu0
      %v1435 = vadd.f32 %v1274, %v1434
      %v1436 = vpop.f32.mrb[0].mxu0
      %v1437 = vpop.f32.mrb[0].mxu0
      %v1438 = vadd.f32 %v1277, %v1437
      %v1439 = vpop.f32.mrb[0].mxu0
      %1440 = vmatprep.mubr.bf16.mxu0 0
      %1441 = vmatmul.mubr.bf16.gmra.mrb[0].mxu0 %v999
      %v1442 = vpop.f32.mrb[0].mxu0
      %v1443 = vadd.f32 %v1282, %v1442
      %v1444 = vpop.f32.mrb[0].mxu0
      %v1445 = vpop.f32.mrb[0].mxu0
      %v1446 = vadd.f32 %v1285, %v1445
      %v1447 = vpop.f32.mrb[0].mxu0
      %1448 = vmatprep.mubr.bf16.mxu0 0
      %1449 = vmatmul.mubr.bf16.gmra.mrb[0].mxu0 %v1002
      %v1450 = vpop.f32.mrb[0].mxu0
      %v1451 = vadd.f32 %v1290, %v1450
      %v1452 = vpop.f32.mrb[0].mxu0
      %v1453 = vpop.f32.mrb[0].mxu0
      %v1454 = vadd.f32 %v1293, %v1453
      %v1455 = vpop.f32.mrb[0].mxu0
      %1456 = vmatprep.mubr.bf16.mxu0 0
      %1457 = vmatmul.mubr.bf16.gmra.mrb[0].mxu0 %v1005
      %v1458 = vpop.f32.mrb[0].mxu0
      %v1459 = vadd.f32 %v1298, %v1458
      %v1460 = vpop.f32.mrb[0].mxu0
      %v1461 = vpop.f32.mrb[0].mxu0
      %v1462 = vadd.f32 %v1301, %v1461
      %v1463 = vpop.f32.mrb[0].mxu0
      %1464 = vmatprep.mubr.bf16.mxu0 0
      %1465 = vmatmul.mubr.bf16.gmra.mrb[0].mxu0 %v1008
      %v1466 = vpop.f32.mrb[0].mxu0
      %v1467 = vadd.f32 %v1306, %v1466
      %v1468 = vpop.f32.mrb[0].mxu0
      %v1469 = vpop.f32.mrb[0].mxu0
      %v1470 = vadd.f32 %v1309, %v1469
      %v1471 = vpop.f32.mrb[0].mxu0
      %1472 = vmatprep.mubr.bf16.mxu0 0
      %1473 = vmatmul.mubr.bf16.gmra.mrb[0].mxu0 %v1011
      %v1474 = vpop.f32.mrb[0].mxu0
      %v1475 = vadd.f32 %v1314, %v1474
      %v1476 = vpop.f32.mrb[0].mxu0
      %v1477 = vpop.f32.mrb[0].mxu0
      %v1478 = vadd.f32 %v1317, %v1477
      %v1479 = vpop.f32.mrb[0].mxu0
      %1480 = vmatprep.mubr.bf16.mxu0 0
      %1481 = vmatmul.mubr.bf16.gmra.mrb[0].mxu0 %v1014
      %v1482 = vpop.f32.mrb[0].mxu0
      %v1483 = vadd.f32 %v1322, %v1482
      %v1484 = vpop.f32.mrb[0].mxu0
      %v1485 = vpop.f32.mrb[0].mxu0
      %v1486 = vadd.f32 %v1325, %v1485
      %v1487 = vpop.f32.mrb[0].mxu0
      %1488 = vmatprep.mubr.bf16.mxu0 0
      %1489 = vmatmul.mubr.bf16.gmra.mrb[0].mxu0 %v1017
      %v1490 = vpop.f32.mrb[0].mxu0
      %v1491 = vadd.f32 %v1330, %v1490
      %v1492 = vpop.f32.mrb[0].mxu0
      %v1493 = vpop.f32.mrb[0].mxu0
      %v1494 = vadd.f32 %v1333, %v1493
      %v1495 = vpop.f32.mrb[0].mxu0
      %1496 = vmatprep.mubr.bf16.mxu0 0
      %1497 = vmatmul.mubr.bf16.gmra.mrb[0].mxu0 %v1020
      %v1498 = vpop.f32.mrb[0].mxu0
      %v1499 = vadd.f32 %v1338, %v1498
      %v1500 = vpop.f32.mrb[0].mxu0
      %v1501 = vpop.f32.mrb[0].mxu0
      %v1502 = vadd.f32 %v1341, %v1501
      %v1503 = vpop.f32.mrb[0].mxu0
      %1504 = vdwg.mxu0
      %1505 = vst [vmem:[%s182] sm:$0xff] %v1379
      %1506 = vst [vmem:[%s182 + $0x8] sm:$0xff] %v1382
      %1507 = vst [vmem:[%s182 + $0x10] sm:$0xff] %v1387
      %1508 = vst [vmem:[%s182 + $0x18] sm:$0xff] %v1390
      %1509 = vst [vmem:[%s182 + $0x20] sm:$0xff] %v1395
      %1510 = vst [vmem:[%s182 + $0x28] sm:$0xff] %v1398
      %1511 = vst [vmem:[%s182 + $0x30] sm:$0xff] %v1403
      %1512 = vst [vmem:[%s182 + $0x38] sm:$0xff] %v1406
      %1513 = vst [vmem:[%s182 + $0x40] sm:$0xff] %v1411
      %1514 = vst [vmem:[%s182 + $0x48] sm:$0xff] %v1414
      %1515 = vst [vmem:[%s182 + $0x50] sm:$0xff] %v1419
      %1516 = vst [vmem:[%s182 + $0x58] sm:$0xff] %v1422
      %1517 = vst [vmem:[%s182 + $0x60] sm:$0xff] %v1427
      %1518 = vst [vmem:[%s182 + $0x68] sm:$0xff] %v1430
      %1519 = vst [vmem:[%s182 + $0x70] sm:$0xff] %v1435
      %1520 = vst [vmem:[%s182 + $0x78] sm:$0xff] %v1438
      %1521 = vst [vmem:[%s182 + $0x80] sm:$0xff] %v1443
      %1522 = vst [vmem:[%s182 + $0x88] sm:$0xff] %v1446
      %1523 = vst [vmem:[%s182 + $0x90] sm:$0xff] %v1451
      %1524 = vst [vmem:[%s182 + $0x98] sm:$0xff] %v1454
      %1525 = vst [vmem:[%s182 + $0xa0] sm:$0xff] %v1459
      %1526 = vst [vmem:[%s182 + $0xa8] sm:$0xff] %v1462
      %1527 = vst [vmem:[%s182 + $0xb0] sm:$0xff] %v1467
      %1528 = vst [vmem:[%s182 + $0xb8] sm:$0xff] %v1470
      %1529 = vst [vmem:[%s182 + $0xc0] sm:$0xff] %v1475
      %1530 = vst [vmem:[%s182 + $0xc8] sm:$0xff] %v1478
      %1531 = vst [vmem:[%s182 + $0xd0] sm:$0xff] %v1483
      %1532 = vst [vmem:[%s182 + $0xd8] sm:$0xff] %v1486
      %1533 = vst [vmem:[%s182 + $0xe0] sm:$0xff] %v1491
      %1534 = vst [vmem:[%s182 + $0xe8] sm:$0xff] %v1494
      %1535 = vst [vmem:[%s182 + $0xf0] sm:$0xff] %v1499
      %1536 = vst [vmem:[%s182 + $0xf8] sm:$0xff] %v1502
      %v1537 = vadd.f32 %v1379, %v1382
      %v1538 = vadd.f32 %v1537, %v1387
      %v1539 = vadd.f32 %v1538, %v1390
      %v1540 = vadd.f32 %v1539, %v1395
      %v1541 = vadd.f32 %v1540, %v1398
      %v1542 = vadd.f32 %v1541, %v1403
      %v1543 = vadd.f32 %v1542, %v1406
      %v1544 = vadd.f32 %v1543, %v1411
      %v1545 = vadd.f32 %v1544, %v1414
      %v1546 = vadd.f32 %v1545, %v1419
      %v1547 = vadd.f32 %v1546, %v1422
      %v1548 = vadd.f32 %v1547, %v1427
      %v1549 = vadd.f32 %v1548, %v1430
      %v1550 = vadd.f32 %v1549, %v1435
      %v1551 = vadd.f32 %v1550, %v1438
      %v1552 = vadd.f32 %v1551, %v1443
      %v1553 = vadd.f32 %v1552, %v1446
      %v1554 = vadd.f32 %v1553, %v1451
      %v1555 = vadd.f32 %v1554, %v1454
      %v1556 = vadd.f32 %v1555, %v1459
      %v1557 = vadd.f32 %v1556, %v1462
      %v1558 = vadd.f32 %v1557, %v1467
      %v1559 = vadd.f32 %v1558, %v1470
      %v1560 = vadd.f32 %v1559, %v1475
      %v1561 = vadd.f32 %v1560, %v1478
      %v1562 = vadd.f32 %v1561, %v1483
      %v1563 = vadd.f32 %v1562, %v1486
      %v1564 = vadd.f32 %v1563, %v1491
      %v1565 = vadd.f32 %v1564, %v1494
      %v1566 = vadd.f32 %v1565, %v1499
      %v1567 = vadd.f32 %v1566, %v1502
      %v1568 = vrot.slane %v1567, 4
      %v1569 = vadd.f32 %v1567, %v1568
      %v1570 = vrot.slane %v1569, 2
      %v1571 = vadd.f32 %v1569, %v1570
      %v1572 = vrot.slane %v1571, 1
      %v1573 = vadd.f32 %v1571, %v1572
      %v1574 = vmul.f32 %v1379, %v1379
      %v1575 = vmul.f32 %v1382, %v1382
      %v1576 = vmul.f32 %v1387, %v1387
      %v1577 = vmul.f32 %v1390, %v1390
      %v1578 = vmul.f32 %v1395, %v1395
      %v1579 = vmul.f32 %v1398, %v1398
      %v1580 = vmul.f32 %v1403, %v1403
      %v1581 = vmul.f32 %v1406, %v1406
      %v1582 = vmul.f32 %v1411, %v1411
      %v1583 = vmul.f32 %v1414, %v1414
      %v1584 = vmul.f32 %v1419, %v1419
      %v1585 = vmul.f32 %v1422, %v1422
      %v1586 = vmul.f32 %v1427, %v1427
      %v1587 = vmul.f32 %v1430, %v1430
      %v1588 = vmul.f32 %v1435, %v1435
      %v1589 = vmul.f32 %v1438, %v1438
      %v1590 = vmul.f32 %v1443, %v1443
      %v1591 = vmul.f32 %v1446, %v1446
      %v1592 = vmul.f32 %v1451, %v1451
      %v1593 = vmul.f32 %v1454, %v1454
      %v1594 = vmul.f32 %v1459, %v1459
      %v1595 = vmul.f32 %v1462, %v1462
      %v1596 = vmul.f32 %v1467, %v1467
      %v1597 = vmul.f32 %v1470, %v1470
      %v1598 = vmul.f32 %v1475, %v1475
      %v1599 = vmul.f32 %v1478, %v1478
      %v1600 = vmul.f32 %v1483, %v1483
      %v1601 = vmul.f32 %v1486, %v1486
      %v1602 = vmul.f32 %v1491, %v1491
      %v1603 = vmul.f32 %v1494, %v1494
      %v1604 = vmul.f32 %v1499, %v1499
      %v1605 = vmul.f32 %v1502, %v1502
      %v1606 = vadd.f32 %v1574, %v1575
      %v1607 = vadd.f32 %v1606, %v1576
      %v1608 = vadd.f32 %v1607, %v1577
      %v1609 = vadd.f32 %v1608, %v1578
      %v1610 = vadd.f32 %v1609, %v1579
      %v1611 = vadd.f32 %v1610, %v1580
      %v1612 = vadd.f32 %v1611, %v1581
      %v1613 = vadd.f32 %v1612, %v1582
      %v1614 = vadd.f32 %v1613, %v1583
      %v1615 = vadd.f32 %v1614, %v1584
      %v1616 = vadd.f32 %v1615, %v1585
      %v1617 = vadd.f32 %v1616, %v1586
      %v1618 = vadd.f32 %v1617, %v1587
      %v1619 = vadd.f32 %v1618, %v1588
      %v1620 = vadd.f32 %v1619, %v1589
      %v1621 = vadd.f32 %v1620, %v1590
      %v1622 = vadd.f32 %v1621, %v1591
      %v1623 = vadd.f32 %v1622, %v1592
      %v1624 = vadd.f32 %v1623, %v1593
      %v1625 = vadd.f32 %v1624, %v1594
      %v1626 = vadd.f32 %v1625, %v1595
      %v1627 = vadd.f32 %v1626, %v1596
      %v1628 = vadd.f32 %v1627, %v1597
      %v1629 = vadd.f32 %v1628, %v1598
      %v1630 = vadd.f32 %v1629, %v1599
      %v1631 = vadd.f32 %v1630, %v1600
      %v1632 = vadd.f32 %v1631, %v1601
      %v1633 = vadd.f32 %v1632, %v1602
      %v1634 = vadd.f32 %v1633, %v1603
      %v1635 = vadd.f32 %v1634, %v1604
      %v1636 = vadd.f32 %v1635, %v1605
      %v1637 = vrot.slane %v1636, 4
      %v1638 = vadd.f32 %v1636, %v1637
      %v1639 = vrot.slane %v1638, 2
      %v1640 = vadd.f32 %v1638, %v1639
      %v1641 = vrot.slane %v1640, 1
      %v1642 = vadd.f32 %v1640, %v1641
      %vm1643 = vcmask 1040384
      %v1644 = vsel %vm1643, %v1573, %v1642
      %1645 = vst [vmem:[%s187] sm:$0x3] %v1644
      %s1646 = smul.u32 32, %s15
      %p1647 = scmp.lt.s32.totalorder %s1646, 63
      %s1648 = scalar_select %p1647, %s1646, 63
      %s1649 = smul.addr %s1648, 8
      %s1650 = scalar_lea.vmem %s2, %s1649
      %p1651 = scmp.lt.s32.totalorder %s15, 1
      %s1652 = scalar_select %p1651, %s15, 1
      %s1653 = smul.addr %s1652, 2
      %s1654 = scalar_lea.vmem %s3, %s1653
      // Predicated region
      $region29: #{encoder_forward.2} parent=27 // pred_check
        %p1655 = pneg %p80
      $region30: #{encoder_forward.2} parent=27 // pred_check_branch
        %1657 = sbr.rel (%p1655) target = $region32
      $region31: #{encoder_forward.2} parent=27 // pred_region
        %s1658 = smul.u32 32, %s15
      $region32: #{encoder_forward.2} parent=27 // pred_fallthru
        _
      // Predicated region
      $region33: #{encoder_forward.2} parent=27 // pred_check
        %p1659 = pneg %p106
      $region34: #{encoder_forward.2} parent=27 // pred_check_branch
        %1661 = sbr.rel (%p1659) target = $region36
      $region35: #{encoder_forward.2} parent=27 // pred_region
        _
      $region36: #{encoder_forward.2} parent=27 // pred_fallthru
        _
    $region28: #{encoder_forward.2} parent=5 // pred_fallthru
      _
    %p1662 = scmp.le.s32.totalorder 2, %s10
    // Predicated region
    $region37: #{encoder_forward.2} parent=5 // pred_check
      %p1663 = pneg %p1662
    $region38: #{encoder_forward.2} parent=5 // pred_check_branch
      %1665 = sbr.rel (%p1663) target = $region40
    $region39: #{encoder_forward.2} parent=5 // pred_region
      %s1666 = ssub.s32 %s10, 2
      // Predicated region
      $region41: #{encoder_forward.2} parent=39 // pred_check
        %p1667 = pneg %p86
      $region42: #{encoder_forward.2} parent=39 // pred_check_branch
        %1669 = sbr.rel (%p1667) target = $region44
      $region43: #{encoder_forward.2} parent=39 // pred_region
        %s1670 = smul.u32 32, %s16
        %p1671 = scmp.lt.s32.totalorder %s1670, 63
        %s1672 = scalar_select %p1671, %s1670, 63
        %s1673 = smul.addr %s1672, 8
        %s1674 = scalar_lea.vmem %s2, %s1673
      $region44: #{encoder_forward.2} parent=39 // pred_fallthru
        _
      // Predicated region
      $region45: #{encoder_forward.2} parent=39 // pred_check
        %p1675 = pneg %p112
      $region46: #{encoder_forward.2} parent=39 // pred_check_branch
        %1677 = sbr.rel (%p1675) target = $region48
      $region47: #{encoder_forward.2} parent=39 // pred_region
        %p1678 = scmp.lt.s32.totalorder %s16, 1
        %s1679 = scalar_select %p1678, %s16, 1
        %s1680 = smul.addr %s1679, 2
        %s1681 = scalar_lea.vmem %s3, %s1680
      $region48: #{encoder_forward.2} parent=39 // pred_fallthru
        _
    $region40: #{encoder_forward.2} parent=5 // pred_fallthru
      _
  $region6: #{encoder_forward.2} parent=0 // loop_footer
    %s14 = sadd.s32 1, %s10
  $region7: #{encoder_forward.2} parent=0 // loop_footer_branch
    %9 = sbr.rel target = $region3
  $region8: #{encoder_forward.2} parent=0 // loop_exit
    _

</llo_original>
